<compile_context>
chip_gen: v7x
topology: tpu7x:2x2x1
jax: 0.10.0
libtpu: 0.0.40
codegen_flags: <defaults>
</compile_context>

<pallas_src>
import jax
import jax.numpy as jnp
from jax.experimental import pallas as pl
from jax.experimental.pallas import tpu as pltpu

# ----------------------------- problem sizes -----------------------------
B, T, V, D = 2, 8, 8, 32          # batch, text tokens, vision tokens, model dim
HEADS, DIM_HEAD = 4, 8
INNER = HEADS * DIM_HEAD          # 32
SCALE = DIM_HEAD ** -0.5
EPS = 1e-5                        # torch nn.LayerNorm default


# ----------------------------- kernel -----------------------------
def mca_kernel(cat_ref, bias_ref, w_ref, out_ref):
    # cat_ref : (3*(B*T+B*V), D)  rows = [x (B*T) ; vision (B*V) ; gamma rows ; beta rows]
    # bias_ref: (B*T, B*V)        additive mask: 0 where attended, -10000 elsewhere
    #                             (block-diagonal over batch in the flattened layout)
    # w_ref   : (4, H, dh, D)     per-head [Wq, Wk, Wv, Wo] slabs, contraction dim last
    # out_ref : (B*T, D)
    n_txt, n_vis = bias_ref.shape
    n_act = n_txt + n_vis
    heads, dim_head, d_model = w_ref.shape[1], w_ref.shape[2], w_ref.shape[3]
    scale = dim_head ** -0.5

    # Static sublane slices of the concatenated operand (offsets are multiples of 8).
    z = cat_ref[pl.ds(0, n_act), :]                  # (B*T+B*V, D) raw activations
    gamma = cat_ref[pl.ds(n_act, n_act), :]          # per-row LN gamma (text then vision)
    beta = cat_ref[pl.ds(2 * n_act, n_act), :]       # per-row LN beta

    # One-pass LayerNorm over the whole text+vision slab: var = E[z^2] - E[z]^2
    # (independent lane reductions), then a single fused affine with the per-row
    # gamma/beta slabs.  self.norm / self.norm_kv of the module.
    mu = jnp.mean(z, axis=-1, keepdims=True)
    var = jnp.mean(z * z, axis=-1, keepdims=True) - mu * mu
    zn = (z - mu) * jax.lax.rsqrt(var + EPS) * gamma + beta

    xn = zn[:n_txt]                                  # (B*T, D) normalized text
    vn = zn[n_txt:]                                  # (B*V, D) normalized vision

    # Head-batched projections in the Mosaic-canonical lane-lane contraction form
    # ('bqd,bkd->bqk'): weights are (H, dh, D) so both operands contract on the lane dim.
    xb = jnp.broadcast_to(xn[None], (heads, n_txt, d_model))
    vb = jnp.broadcast_to(vn[None], (heads, n_vis, d_model))
    q = jnp.einsum('hnd,hkd->hnk', xb, w_ref[0],
                   preferred_element_type=jnp.float32) * scale           # (H, B*T, dh)
    k = jnp.einsum('hnd,hkd->hnk', vb, w_ref[1],
                   preferred_element_type=jnp.float32)                   # (H, B*V, dh)
    v = jnp.einsum('hnd,hkd->hnk', vb, w_ref[2],
                   preferred_element_type=jnp.float32)                   # (H, B*V, dh)

    # sim = q @ k^T per head, plus the precomputed additive mask (covers both the
    # module's -10000 masking and the block-diagonal batch structure).
    bias = bias_ref[...]                                                 # (B*T, B*V)
    sim = jnp.einsum('htk,hvk->htv', q, k,
                     preferred_element_type=jnp.float32) + bias[None]    # (H, B*T, B*V)

    # softmax over the vision axis; denominator reciprocal on the EUP slot.
    m = jnp.max(sim, axis=-1, keepdims=True)
    p = jnp.exp(sim - m)
    attn = p * pl.reciprocal(jnp.sum(p, axis=-1, keepdims=True), approx=True)

    # Multiplicative mask recovered in-kernel from the bias (threshold compare, not
    # float equality) — zero masked weights, no renormalization (matches the module).
    mult = (bias > -5000.0).astype(jnp.float32)
    attn = attn * mult[None]

    o = jnp.einsum('htv,hvk->htk', attn, v,
                   preferred_element_type=jnp.float32)                   # (H, B*T, dh)

    # to_out: concat over heads then @ Wo  ==  sum_h (o_h @ Wo_h).  Head-batched matmul
    # + a 4-slab add keeps the kernel free of minor-dim reshapes/transposes.
    out_h = jnp.einsum('htk,hko->hto', o, w_ref[3],
                       preferred_element_type=jnp.float32)               # (H, B*T, D)
    out_ref[...] = jnp.sum(out_h, axis=0)                                # (B*T, D)


# ----------------------------- wrapper -----------------------------
def masked_cross_attention(x, vision, attention_mask, params):
    b, t, d = x.shape
    nv = vision.shape[1]

    # Fold batch into the row (sublane) axis; one grid step handles everything.
    x2d = x.reshape(b * t, d)
    v2d = vision.reshape(b * nv, d)

    # Additive bias only (multiplicative mask is derived in-kernel), block-diagonal over
    # batch so the flattened attention cannot mix batches.
    mask_tv = jnp.transpose(attention_mask, (0, 2, 1)).astype(jnp.float32)   # (B, T, V)
    eye = jnp.eye(b, dtype=jnp.float32)
    mult = (mask_tv[:, :, None, :] * eye[:, None, :, None]).reshape(b * t, b * nv)
    bias = (mult - 1.0) * 10000.0                                            # 0 or -10000

    # Single concatenated activation/LN operand -> one input DMA for all of it.
    cat = jnp.concatenate([x2d, v2d, params["ln_full"]], axis=0)   # (3*(b*t+b*nv), d)

    vmem = lambda: pl.BlockSpec(memory_space=pltpu.MemorySpace.VMEM)
    out2d = pl.pallas_call(
        mca_kernel,
        out_shape=jax.ShapeDtypeStruct((b * t, d), jnp.float32),
        in_specs=[vmem(), vmem(), vmem()],
        out_specs=vmem(),
        # NOTE: ~130 KiB padded VMEM total, no vmem_limit / pipelining tuning needed.
        # If B/T/V grow, add a leading "parallel" batch grid axis (v7x: 2 TensorCores).
    )(cat, bias, params["w_pack"])
    return out2d.reshape(b, t, d)


# ----------------------------- pure-JAX reference (faithful per-batch torch forward) ---
def reference(x, vision, attention_mask, p):
    def ln(z, g, b_):
        mu = z.mean(-1, keepdims=True)
        var = ((z - mu) ** 2).mean(-1, keepdims=True)
        return (z - mu) / jnp.sqrt(var + EPS) * g + b_

    xn = ln(x, p["gx"], p["bx"])
    vn = ln(vision, p["gv"], p["bv"])
    q = xn @ p["wq"]
    kv = vn @ p["wkv"]
    k, v = kv[..., :INNER], kv[..., INNER:]
    qh = q.reshape(B, T, HEADS, DIM_HEAD).transpose(0, 2, 1, 3) * SCALE
    kh = k.reshape(B, V, HEADS, DIM_HEAD).transpose(0, 2, 1, 3)
    vh = v.reshape(B, V, HEADS, DIM_HEAD).transpose(0, 2, 1, 3)
    sim = jnp.einsum('bhtd,bhvd->bhtv', qh, kh)
    mask_tv = jnp.transpose(attention_mask, (0, 2, 1))
    sim = sim + jnp.where(mask_tv == 0, -10000.0, 0.0)[:, None]
    attn = jax.nn.softmax(sim, axis=-1) * mask_tv[:, None]
    o = jnp.einsum('bhtv,bhvd->bhtd', attn, vh)
    return o.transpose(0, 2, 1, 3).reshape(B, T, INNER) @ p["wo"]


# ----------------------------- deterministic parameter init -----------------------------
def init_params(key):
    ks = jax.random.split(key, 7)
    s = 0.1
    # LayerNorm affine perturbed away from (1, 0) so the gamma/beta path is exercised.
    gx = 1.0 + s * jax.random.normal(ks[0], (D,), jnp.float32)
    bx = s * jax.random.normal(ks[1], (D,), jnp.float32)
    gv = 1.0 + s * jax.random.normal(ks[2], (D,), jnp.float32)
    bv = s * jax.random.normal(ks[3], (D,), jnp.float32)
    wq = s * jax.random.normal(ks[4], (D, INNER), jnp.float32)       # to_q (no bias)
    wkv = s * jax.random.normal(ks[5], (D, 2 * INNER), jnp.float32)  # to_kv (k then v)
    wo = s * jax.random.normal(ks[6], (INNER, D), jnp.float32)       # to_out (no bias)

    # ---- one-time packing into the layouts the kernel consumes ----
    # Per-head weight slabs with the contraction dim LAST: (H, dh, D) -> minor dims
    # (8, 32), ~4x smaller after (8,128) padding than the old (H, D, dh) layout.
    wq_h = wq.reshape(D, HEADS, DIM_HEAD).transpose(1, 2, 0)                # (H, dh, D)
    wk_h = wkv[:, :INNER].reshape(D, HEADS, DIM_HEAD).transpose(1, 2, 0)    # (H, dh, D)
    wv_h = wkv[:, INNER:].reshape(D, HEADS, DIM_HEAD).transpose(1, 2, 0)    # (H, dh, D)
    wo_h = wo.reshape(HEADS, DIM_HEAD, D)                                   # (H, dh, D)
    w_pack = jnp.stack([wq_h, wk_h, wv_h, wo_h])                            # (4, H, dh, D)

    # LN gamma/beta pre-broadcast to per-row slabs matching the flattened (B*T+B*V, D)
    # activation layout (one-time cost at init, zero per-call wrapper work).
    n_txt, n_vis = B * T, B * V
    gamma_full = jnp.concatenate([jnp.tile(gx[None, :], (n_txt, 1)),
                                  jnp.tile(gv[None, :], (n_vis, 1))], axis=0)
    beta_full = jnp.concatenate([jnp.tile(bx[None, :], (n_txt, 1)),
                                 jnp.tile(bv[None, :], (n_vis, 1))], axis=0)
    ln_full = jnp.concatenate([gamma_full, beta_full], axis=0)              # (2*(BT+BV), D)

    return {
        # raw params (used by the pure-JAX reference)
        "gx": gx, "bx": bx, "gv": gv, "bv": bv, "wq": wq, "wkv": wkv, "wo": wo,
        # packed params (used by the Pallas kernel)
        "w_pack": w_pack, "ln_full": ln_full,
    }


if __name__ == "__main__":
    key = jax.random.PRNGKey(0)
    k_x, k_v, k_m, k_p = jax.random.split(key, 4)
    x = jax.random.normal(k_x, (B, T, D), jnp.float32)
    vision = jax.random.normal(k_v, (B, V, D), jnp.float32)
    attention_mask = (jax.random.uniform(k_m, (B, V, T)) < 0.6).astype(jnp.float32)
    params = init_params(k_p)

    out = masked_cross_attention(x, vision, attention_mask, params)
    out = jax.block_until_ready(out)

    with jax.default_matmul_precision("highest"):
        ref = reference(x, vision, attention_mask, params)

    assert out.shape == (B, T, D)
    max_err = float(jnp.max(jnp.abs(out - ref)))
    assert jnp.allclose(out, ref, atol=1e-3, rtol=1e-3), max_err
    print("KERNEL_OK")
</pallas_src>

<mosaic_0001>
module attributes {stable_mosaic.version = 11 : i64} {
  func.func @mca_kernel(%arg0: memref<96x32xf32, #tpu.memory_space<vmem>>, %arg1: memref<16x16xf32, #tpu.memory_space<vmem>>, %arg2: memref<4x4x8x32xf32, #tpu.memory_space<vmem>>, %arg3: memref<16x32xf32, #tpu.memory_space<vmem>>) attributes {dimension_semantics = [], scalar_prefetch = 0 : i64, scratch_operands = 0 : i64, tpu.core_type = #tpu.core_type<tc>} {
    %c0 = arith.constant 0 : index
    %c0_0 = arith.constant 0 : index
    %0 = vector.load %arg0[%c0, %c0_0] : memref<96x32xf32, #tpu.memory_space<vmem>>, vector<32x32xf32>
    %c32 = arith.constant 32 : index
    %c0_1 = arith.constant 0 : index
    %1 = vector.load %arg0[%c32, %c0_1] : memref<96x32xf32, #tpu.memory_space<vmem>>, vector<32x32xf32>
    %c64 = arith.constant 64 : index
    %c0_2 = arith.constant 0 : index
    %2 = vector.load %arg0[%c64, %c0_2] : memref<96x32xf32, #tpu.memory_space<vmem>>, vector<32x32xf32>
    %cst = arith.constant dense<0.000000e+00> : vector<32xf32>
    %3 = vector.multi_reduction <add>, %0, %cst [1] : vector<32x32xf32> to vector<32xf32>
    %4 = vector.shape_cast %3 : vector<32xf32> to vector<32x1xf32>
    %cst_3 = arith.constant 3.200000e+01 : f32
    %5 = vector.broadcast %cst_3 : f32 to vector<32x1xf32>
    %6 = arith.divf %4, %5 : vector<32x1xf32>
    %7 = arith.mulf %0, %0 : vector<32x32xf32>
    %cst_4 = arith.constant dense<0.000000e+00> : vector<32xf32>
    %8 = vector.multi_reduction <add>, %7, %cst_4 [1] : vector<32x32xf32> to vector<32xf32>
    %9 = vector.shape_cast %8 : vector<32xf32> to vector<32x1xf32>
    %cst_5 = arith.constant 3.200000e+01 : f32
    %10 = vector.broadcast %cst_5 : f32 to vector<32x1xf32>
    %11 = arith.divf %9, %10 : vector<32x1xf32>
    %12 = arith.mulf %6, %6 : vector<32x1xf32>
    %13 = arith.subf %11, %12 : vector<32x1xf32>
    %14 = vector.broadcast %6 : vector<32x1xf32> to vector<32x32xf32>
    %15 = arith.subf %0, %14 : vector<32x32xf32>
    %cst_6 = arith.constant 9.99999974E-6 : f32
    %16 = vector.broadcast %cst_6 : f32 to vector<32x1xf32>
    %17 = arith.addf %13, %16 : vector<32x1xf32>
    %18 = math.rsqrt %17 : vector<32x1xf32>
    %19 = vector.broadcast %18 : vector<32x1xf32> to vector<32x32xf32>
    %20 = arith.mulf %15, %19 : vector<32x32xf32>
    %21 = arith.mulf %20, %1 : vector<32x32xf32>
    %22 = arith.addf %21, %2 : vector<32x32xf32>
    %23 = vector.extract_strided_slice %22 {offsets = [0, 0], sizes = [16, 32], strides = [1, 1]} : vector<32x32xf32> to vector<16x32xf32>
    %24 = vector.extract_strided_slice %22 {offsets = [16, 0], sizes = [16, 32], strides = [1, 1]} : vector<32x32xf32> to vector<16x32xf32>
    %25 = vector.shape_cast %23 : vector<16x32xf32> to vector<1x16x32xf32>
    %26 = vector.shape_cast %25 : vector<1x16x32xf32> to vector<1x16x32xf32>
    %27 = vector.broadcast %26 : vector<1x16x32xf32> to vector<4x16x32xf32>
    %28 = vector.shape_cast %24 : vector<16x32xf32> to vector<1x16x32xf32>
    %29 = vector.shape_cast %28 : vector<1x16x32xf32> to vector<1x16x32xf32>
    %30 = vector.broadcast %29 : vector<1x16x32xf32> to vector<4x16x32xf32>
    %c0_7 = arith.constant 0 : index
    %c0_8 = arith.constant 0 : index
    %c0_9 = arith.constant 0 : index
    %c0_10 = arith.constant 0 : index
    %31 = vector.load %arg2[%c0_7, %c0_8, %c0_9, %c0_10] : memref<4x4x8x32xf32, #tpu.memory_space<vmem>>, vector<1x4x8x32xf32>
    %32 = vector.shape_cast %31 : vector<1x4x8x32xf32> to vector<4x8x32xf32>
    "tpu.trace_start"() <{level = 10 : i32, message = "hnd,hkd->hnk"}> : () -> ()
    %cst_11 = arith.constant dense<0.000000e+00> : vector<4x16x8xf32>
    %33 = tpu.matmul %27, %32, %cst_11 {dimension_numbers = #tpu.dot_dimension_numbers<[2], [2], [1], [1], [0, 0, 0, 1, 1, 1], [0], [0]>} : vector<4x16x32xf32>, vector<4x8x32xf32>, vector<4x16x8xf32> -> vector<4x16x8xf32>
    "tpu.trace_stop"() : () -> ()
    %cst_12 = arith.constant 0.353553385 : f32
    %34 = vector.broadcast %cst_12 : f32 to vector<4x16x8xf32>
    %35 = arith.mulf %33, %34 : vector<4x16x8xf32>
    %c1 = arith.constant 1 : index
    %c0_13 = arith.constant 0 : index
    %c0_14 = arith.constant 0 : index
    %c0_15 = arith.constant 0 : index
    %36 = vector.load %arg2[%c1, %c0_13, %c0_14, %c0_15] : memref<4x4x8x32xf32, #tpu.memory_space<vmem>>, vector<1x4x8x32xf32>
    %37 = vector.shape_cast %36 : vector<1x4x8x32xf32> to vector<4x8x32xf32>
    "tpu.trace_start"() <{level = 10 : i32, message = "hnd,hkd->hnk"}> : () -> ()
    %cst_16 = arith.constant dense<0.000000e+00> : vector<4x16x8xf32>
    %38 = tpu.matmul %30, %37, %cst_16 {dimension_numbers = #tpu.dot_dimension_numbers<[2], [2], [1], [1], [0, 0, 0, 1, 1, 1], [0], [0]>} : vector<4x16x32xf32>, vector<4x8x32xf32>, vector<4x16x8xf32> -> vector<4x16x8xf32>
    "tpu.trace_stop"() : () -> ()
    %c2 = arith.constant 2 : index
    %c0_17 = arith.constant 0 : index
    %c0_18 = arith.constant 0 : index
    %c0_19 = arith.constant 0 : index
    %39 = vector.load %arg2[%c2, %c0_17, %c0_18, %c0_19] : memref<4x4x8x32xf32, #tpu.memory_space<vmem>>, vector<1x4x8x32xf32>
    %40 = vector.shape_cast %39 : vector<1x4x8x32xf32> to vector<4x8x32xf32>
    "tpu.trace_start"() <{level = 10 : i32, message = "hnd,hkd->hnk"}> : () -> ()
    %cst_20 = arith.constant dense<0.000000e+00> : vector<4x16x8xf32>
    %41 = tpu.matmul %30, %40, %cst_20 {dimension_numbers = #tpu.dot_dimension_numbers<[2], [2], [1], [1], [0, 0, 0, 1, 1, 1], [0], [0]>} : vector<4x16x32xf32>, vector<4x8x32xf32>, vector<4x16x8xf32> -> vector<4x16x8xf32>
    "tpu.trace_stop"() : () -> ()
    %c0_21 = arith.constant 0 : index
    %c0_22 = arith.constant 0 : index
    %42 = vector.load %arg1[%c0_21, %c0_22] : memref<16x16xf32, #tpu.memory_space<vmem>>, vector<16x16xf32>
    "tpu.trace_start"() <{level = 10 : i32, message = "htk,hvk->htv"}> : () -> ()
    %cst_23 = arith.constant dense<0.000000e+00> : vector<4x16x16xf32>
    %43 = tpu.matmul %35, %38, %cst_23 {dimension_numbers = #tpu.dot_dimension_numbers<[2], [2], [1], [1], [0, 0, 0, 1, 1, 1], [0], [0]>} : vector<4x16x8xf32>, vector<4x16x8xf32>, vector<4x16x16xf32> -> vector<4x16x16xf32>
    "tpu.trace_stop"() : () -> ()
    %44 = vector.shape_cast %42 : vector<16x16xf32> to vector<1x16x16xf32>
    %45 = vector.broadcast %44 : vector<1x16x16xf32> to vector<4x16x16xf32>
    %46 = arith.addf %43, %45 : vector<4x16x16xf32>
    %cst_24 = arith.constant dense<0xFF800000> : vector<4x16xf32>
    %47 = vector.multi_reduction <maximumf>, %46, %cst_24 [2] : vector<4x16x16xf32> to vector<4x16xf32>
    %48 = vector.shape_cast %47 : vector<4x16xf32> to vector<4x16x1xf32>
    %49 = vector.broadcast %48 : vector<4x16x1xf32> to vector<4x16x16xf32>
    %50 = arith.subf %46, %49 : vector<4x16x16xf32>
    %51 = math.exp %50 : vector<4x16x16xf32>
    %cst_25 = arith.constant dense<0.000000e+00> : vector<4x16xf32>
    %52 = vector.multi_reduction <add>, %51, %cst_25 [2] : vector<4x16x16xf32> to vector<4x16xf32>
    %53 = vector.shape_cast %52 : vector<4x16xf32> to vector<4x16x1xf32>
    %54 = tpu.reciprocal %53 {approx = true} : vector<4x16x1xf32> -> vector<4x16x1xf32>
    %55 = vector.broadcast %54 : vector<4x16x1xf32> to vector<4x16x16xf32>
    %56 = arith.mulf %51, %55 : vector<4x16x16xf32>
    %cst_26 = arith.constant -5.000000e+03 : f32
    %57 = vector.broadcast %cst_26 : f32 to vector<16x16xf32>
    %58 = arith.cmpf ogt, %42, %57 : vector<16x16xf32>
    %59 = arith.extui %58 : vector<16x16xi1> to vector<16x16xi32>
    %60 = arith.sitofp %59 : vector<16x16xi32> to vector<16x16xf32>
    %61 = vector.shape_cast %60 : vector<16x16xf32> to vector<1x16x16xf32>
    %62 = vector.broadcast %61 : vector<1x16x16xf32> to vector<4x16x16xf32>
    %63 = arith.mulf %56, %62 : vector<4x16x16xf32>
    "tpu.trace_start"() <{level = 10 : i32, message = "htv,hvk->htk"}> : () -> ()
    %cst_27 = arith.constant dense<0.000000e+00> : vector<4x16x8xf32>
    %64 = tpu.matmul %63, %41, %cst_27 {dimension_numbers = #tpu.dot_dimension_numbers<[2], [1], [1], [2], [0, 0, 0, 1, 1, 2], [0], [0]>} : vector<4x16x16xf32>, vector<4x16x8xf32>, vector<4x16x8xf32> -> vector<4x16x8xf32>
    "tpu.trace_stop"() : () -> ()
    %c3 = arith.constant 3 : index
    %c0_28 = arith.constant 0 : index
    %c0_29 = arith.constant 0 : index
    %c0_30 = arith.constant 0 : index
    %65 = vector.load %arg2[%c3, %c0_28, %c0_29, %c0_30] : memref<4x4x8x32xf32, #tpu.memory_space<vmem>>, vector<1x4x8x32xf32>
    %66 = vector.shape_cast %65 : vector<1x4x8x32xf32> to vector<4x8x32xf32>
    "tpu.trace_start"() <{level = 10 : i32, message = "htk,hko->hto"}> : () -> ()
    %cst_31 = arith.constant dense<0.000000e+00> : vector<4x16x32xf32>
    %67 = tpu.matmul %64, %66, %cst_31 {dimension_numbers = #tpu.dot_dimension_numbers<[2], [1], [1], [2], [0, 0, 0, 1, 1, 2], [0], [0]>} : vector<4x16x8xf32>, vector<4x8x32xf32>, vector<4x16x32xf32> -> vector<4x16x32xf32>
    "tpu.trace_stop"() : () -> ()
    %cst_32 = arith.constant dense<0.000000e+00> : vector<16x32xf32>
    %68 = vector.multi_reduction <add>, %67, %cst_32 [0] : vector<4x16x32xf32> to vector<16x32xf32>
    %c0_33 = arith.constant 0 : index
    %c0_34 = arith.constant 0 : index
    %69 = vector.load %arg3[%c0_33, %c0_34] : memref<16x32xf32, #tpu.memory_space<vmem>>, vector<16x32xf32>
    tpu.vector_store %arg3[%c0_33, %c0_34], %68 {strides = array<i32>} : memref<16x32xf32, #tpu.memory_space<vmem>>, vector<16x32xf32>,
    return
  }
}

</mosaic_0001>

<llo_original>
// kernel: tpu_custom_call.1
$region0: #{tpu_custom_call.1}
  #allocation0 [shape = 'u32[]', space=smem, size = 0x4, offset = 0x4, fixed_abs, tag = 'smem constant byte address 0x4 - core index']
  #allocation1 [shape = 'u32[144,128]{1,0:T(1,128)}', space=vmem, size = 0x12000, scoped, tag = 'internal scratch']
  %s0 = inlined_call_operand.vmem [shape: f32[96,32], index: 0, kind: input, shape index: {}]
  %s1 = inlined_call_operand.hbm [shape: f32[16,16], index: 1, kind: input, shape index: {}]
  %s2 = inlined_call_operand.vmem [shape: f32[4,4,8,32], index: 2, kind: input, shape index: {}]
  %s3 = inlined_call_operand.hbm [shape: f32[16,32], index: 3, kind: output, shape index: {}]
  %s4 = sld [smem:[#allocation0]]
  $region26: #{tpu_custom_call.1} parent=0
    _
  %s6 = ssub.s32 1, %s4
  %s7 = scalar_select 0, %s6, %s4
  $region1: #{tpu_custom_call.1} parent=0
    #allocation2 [shape = 'u8[8192]{0}', space=vmem, size = 0x2000, scoped, tag = 'input window, operand 1, single buffered']
    #allocation3 [shape = 's32[1]{0}', space=sflag, size = 0x4, scoped, tag = 'scoped memory for tpu_custom_call.1']
    #allocation4 [shape = 's32[1]{0}', space=sflag, size = 0x4, scoped, tag = 'scoped memory for tpu_custom_call.1']
    #allocation5 [shape = 'u8[8192]{0}', space=vmem, size = 0x2000, scoped, tag = 'output window, operand 0, single buffered']
    %8 = vsyncpa [#allocation3], 0
    %9 = vsyncpa [#allocation4], 0
    // Predicated region
    $region2: #{tpu_custom_call.1} parent=1 // pred_check
      _
    $region3: #{tpu_custom_call.1} parent=1 // pred_check_branch
      %11 = sbr.rel (0) target = $region5
    $region4: #{tpu_custom_call.1} parent=1 // pred_region
      _
    $region5: #{tpu_custom_call.1} parent=1 // pred_fallthru
      _
    // Predicated region
    $region6: #{tpu_custom_call.1} parent=1 // pred_check
      _
    $region7: #{tpu_custom_call.1} parent=1 // pred_check_branch
      %13 = sbr.rel (0) target = $region9
    $region8: #{tpu_custom_call.1} parent=1 // pred_region
      %s15 = ssub.s32 256, 256
      %16 = vsyncadd [#allocation3], %s15
      %s17 = sshll.u32 [#allocation2], 4
      %s18 = int_to_ptr.vmem [resolvable:$true] %s17
      %23 = dma.hbm_to_vmem [thread:$0]  %s1, 256, %s18, [#allocation3], 128, 128, 8
    $region9: #{tpu_custom_call.1} parent=1 // pred_fallthru
      _
    // Predicated region
    $region10: #{tpu_custom_call.1} parent=1 // pred_check
      _
    $region11: #{tpu_custom_call.1} parent=1 // pred_check_branch
      %25 = sbr.rel (0) target = $region13
    $region12: #{tpu_custom_call.1} parent=1 // pred_region
      _
    $region13: #{tpu_custom_call.1} parent=1 // pred_fallthru
      _
    // Predicated region
    $region14: #{tpu_custom_call.1} parent=1 // pred_check
      _
    $region15: #{tpu_custom_call.1} parent=1 // pred_check_branch
      %27 = sbr.rel (0) target = $region17
    $region16: #{tpu_custom_call.1} parent=1 // pred_region
      %28 = dma.done [#allocation3], 256
    $region17: #{tpu_custom_call.1} parent=1 // pred_fallthru
      _
    %v29 = vld [vmem:[%s0] sm:$0xff]
    %v30 = vld [vmem:[%s0 + $0x8] sm:$0xff]
    %v31 = vld [vmem:[%s0 + $0x10] sm:$0xff]
    %v32 = vld [vmem:[%s0 + $0x18] sm:$0xff]
    %v33 = vld [vmem:[%s0 + $0x20] sm:$0xff]
    %v34 = vld [vmem:[%s0 + $0x28] sm:$0xff]
    %v35 = vld [vmem:[%s0 + $0x30] sm:$0xff]
    %v36 = vld [vmem:[%s0 + $0x38] sm:$0xff]
    %v37 = vld [vmem:[%s0 + $0x40] sm:$0xff]
    %v38 = vld [vmem:[%s0 + $0x48] sm:$0xff]
    %v39 = vld [vmem:[%s0 + $0x50] sm:$0xff]
    %v40 = vld [vmem:[%s0 + $0x58] sm:$0xff]
    %vm41 = vcmask 261120
    %v42 = vsel %vm41, %v29, 0.0
    %43 = vadd.xlane.f32.xlu0 %v42
    %v44 = vpop.xlane.xlu0 %43
    %v45 = vsel %vm41, %v30, 0.0
    %46 = vadd.xlane.f32.xlu0 %v45
    %v47 = vpop.xlane.xlu0 %46
    %v48 = vsel %vm41, %v31, 0.0
    %49 = vadd.xlane.f32.xlu0 %v48
    %v50 = vpop.xlane.xlu0 %49
    %v51 = vsel %vm41, %v32, 0.0
    %52 = vadd.xlane.f32.xlu0 %v51
    %v53 = vpop.xlane.xlu0 %52
    %v54 = vrcp.pop 32.0
    %v55 = vmul.f32 %v44, %v54
    %v56 = vmul.f32 %v47, %v54
    %v57 = vmul.f32 %v50, %v54
    %v58 = vmul.f32 %v53, %v54
    %v59 = vmul.f32 %v29, %v29
    %v60 = vmul.f32 %v30, %v30
    %v61 = vmul.f32 %v31, %v31
    %v62 = vmul.f32 %v32, %v32
    %v63 = vsel %vm41, %v59, 0.0
    %64 = vadd.xlane.f32.xlu0 %v63
    %v65 = vpop.xlane.xlu0 %64
    %v66 = vsel %vm41, %v60, 0.0
    %67 = vadd.xlane.f32.xlu0 %v66
    %v68 = vpop.xlane.xlu0 %67
    %v69 = vsel %vm41, %v61, 0.0
    %70 = vadd.xlane.f32.xlu0 %v69
    %v71 = vpop.xlane.xlu0 %70
    %v72 = vsel %vm41, %v62, 0.0
    %73 = vadd.xlane.f32.xlu0 %v72
    %v74 = vpop.xlane.xlu0 %73
    %v75 = vmul.f32 %v65, %v54
    %v76 = vmul.f32 %v68, %v54
    %v77 = vmul.f32 %v71, %v54
    %v78 = vmul.f32 %v74, %v54
    %v79 = vmul.f32 %v55, %v55
    %v80 = vmul.f32 %v56, %v56
    %v81 = vmul.f32 %v57, %v57
    %v82 = vmul.f32 %v58, %v58
    %v83 = vsub.f32 %v75, %v79
    %v84 = vsub.f32 %v76, %v80
    %v85 = vsub.f32 %v77, %v81
    %v86 = vsub.f32 %v78, %v82
    %v87 = vsub.f32 %v29, %v55
    %v88 = vsub.f32 %v30, %v56
    %v89 = vsub.f32 %v31, %v57
    %v90 = vsub.f32 %v32, %v58
    %v91 = vadd.f32 %v83, 1e-05
    %v92 = vadd.f32 %v84, 1e-05
    %v93 = vadd.f32 %v85, 1e-05
    %v94 = vadd.f32 %v86, 1e-05
    %v95 = vrsqrt.pop %v91
    %v96 = vrsqrt.pop %v92
    %v97 = vrsqrt.pop %v93
    %v98 = vrsqrt.pop %v94
    %v99 = vmul.f32 %v87, %v95
    %v100 = vmul.f32 %v88, %v96
    %v101 = vmul.f32 %v89, %v97
    %v102 = vmul.f32 %v90, %v98
    %v103 = vmul.f32 %v99, %v33
    %v104 = vmul.f32 %v100, %v34
    %v105 = vmul.f32 %v101, %v35
    %v106 = vmul.f32 %v102, %v36
    %v107 = vadd.f32 %v103, %v37
    %v108 = vadd.f32 %v104, %v38
    %v109 = vadd.f32 %v105, %v39
    %v110 = vadd.f32 %v106, %v40
    %v111 = vld [vmem:[%s2] sm:$0xff]
    %v112 = vld [vmem:[%s2 + $0x8] sm:$0xff]
    %v113 = vld [vmem:[%s2 + $0x10] sm:$0xff]
    %v114 = vld [vmem:[%s2 + $0x18] sm:$0xff]
    %v116 = vsel %vm41, %v107, 0
    %v119 = vsel %vm41, %v108, 0
    %v122 = vsel %vm41, %v111, 0
    %124 = vmatprep.subr.mxu0 0.0
    %125 = vmatpush1.xpose.msra.mxu0 %v122
    %126 = vmatprep.subr.mxu0 0.0
    %127 = vmatpush1.xpose.msra.mxu0 0.0
    %128 = vmatprep.subr.mxu0 0.0
    %129 = vmatpush1.xpose.msra.mxu0 0.0
    %130 = vmatprep.subr.mxu0 0.0
    %131 = vmatpush1.xpose.msra.mxu0 0.0
    %132 = vmatprep.subr.mxu0 0.0
    %133 = vmatpush1.xpose.msra.mxu0 0.0
    %134 = vmatprep.subr.mxu0 0.0
    %135 = vmatpush1.xpose.msra.mxu0 0.0
    %136 = vmatprep.subr.mxu0 0.0
    %137 = vmatpush1.xpose.msra.mxu0 0.0
    %138 = vmatprep.subr.mxu0 0.0
    %139 = vmatpush1.xpose.msra.mxu0 0.0
    %140 = vmatprep.subr.mxu0 0.0
    %141 = vmatpush1.xpose.msra.mxu0 0.0
    %142 = vmatprep.subr.mxu0 0.0
    %143 = vmatpush1.xpose.msra.mxu0 0.0
    %144 = vmatprep.subr.mxu0 0.0
    %145 = vmatpush1.xpose.msra.mxu0 0.0
    %146 = vmatprep.subr.mxu0 0.0
    %147 = vmatpush1.xpose.msra.mxu0 0.0
    %148 = vmatprep.subr.mxu0 0.0
    %149 = vmatpush1.xpose.msra.mxu0 0.0
    %150 = vmatprep.subr.mxu0 0.0
    %151 = vmatpush1.xpose.msra.mxu0 0.0
    %152 = vmatprep.subr.mxu0 0.0
    %153 = vmatpush1.xpose.msra.mxu0 0.0
    %154 = vmatprep.subr.mxu0 0.0
    %155 = vmatpush1.xpose.msra.mxu0 0.0
    %156 = vmatprep.subr.mxu0 0.0
    %157 = vmatpush1.xpose.msra.mxu0 0.0
    %158 = vmatprep.subr.mxu0 0.0
    %159 = vmatpush1.xpose.msra.mxu0 0.0
    %160 = vmatprep.subr.mxu0 0.0
    %161 = vmatpush1.xpose.msra.mxu0 0.0
    %162 = vmatprep.subr.mxu0 0.0
    %163 = vmatpush1.xpose.msra.mxu0 0.0
    %164 = vmatprep.subr.mxu0 0.0
    %165 = vmatpush1.xpose.msra.mxu0 0.0
    %166 = vmatprep.subr.mxu0 0.0
    %167 = vmatpush1.xpose.msra.mxu0 0.0
    %168 = vmatprep.subr.mxu0 0.0
    %169 = vmatpush1.xpose.msra.mxu0 0.0
    %170 = vmatprep.subr.mxu0 0.0
    %171 = vmatpush1.xpose.msra.mxu0 0.0
    %172 = vmatprep.subr.mxu0 0.0
    %173 = vmatpush1.xpose.msra.mxu0 0.0
    %174 = vmatprep.subr.mxu0 0.0
    %175 = vmatpush1.xpose.msra.mxu0 0.0
    %176 = vmatprep.subr.mxu0 0.0
    %177 = vmatpush1.xpose.msra.mxu0 0.0
    %178 = vmatprep.subr.mxu0 0.0
    %179 = vmatpush1.xpose.msra.mxu0 0.0
    %180 = vmatprep.subr.mxu0 0.0
    %181 = vmatpush1.xpose.msra.mxu0 0.0
    %182 = vmatprep.subr.mxu0 0.0
    %183 = vmatpush1.xpose.msra.mxu0 0.0
    %184 = vmatprep.subr.mxu0 0.0
    %185 = vmatpush1.xpose.msra.mxu0 0.0
    %186 = vmatprep.subr.mxu0 0.0
    %187 = vmatpush1.xpose.msra.mxu0 0.0
    %188 = vmatprep.mubr.f32.mxu0 0.0
    %189 = vmatmul.mubr.f32.gmra.mrb[0].mxu0 %v116
    %v190 = vpop.f32.mrb[0].mxu0
    %v191 = vadd.f32 0.0, %v190
    %v192 = vpop.f32.mrb[0].mxu0
    %193 = vmatprep.mubr.f32.mxu0 0.0
    %194 = vmatmul.mubr.f32.gmra.mrb[0].mxu0 %v119
    %v195 = vpop.f32.mrb[0].mxu0
    %v196 = vadd.f32 0.0, %v195
    %v197 = vpop.f32.mrb[0].mxu0
    %198 = vdwg.mxu0
    %v200 = vsel %vm41, %v112, 0
    %202 = vmatprep.subr.mxu0 0.0
    %203 = vmatpush1.xpose.msra.mxu0 %v200
    %204 = vmatprep.subr.mxu0 0.0
    %205 = vmatpush1.xpose.msra.mxu0 0.0
    %206 = vmatprep.subr.mxu0 0.0
    %207 = vmatpush1.xpose.msra.mxu0 0.0
    %208 = vmatprep.subr.mxu0 0.0
    %209 = vmatpush1.xpose.msra.mxu0 0.0
    %210 = vmatprep.subr.mxu0 0.0
    %211 = vmatpush1.xpose.msra.mxu0 0.0
    %212 = vmatprep.subr.mxu0 0.0
    %213 = vmatpush1.xpose.msra.mxu0 0.0
    %214 = vmatprep.subr.mxu0 0.0
    %215 = vmatpush1.xpose.msra.mxu0 0.0
    %216 = vmatprep.subr.mxu0 0.0
    %217 = vmatpush1.xpose.msra.mxu0 0.0
    %218 = vmatprep.subr.mxu0 0.0
    %219 = vmatpush1.xpose.msra.mxu0 0.0
    %220 = vmatprep.subr.mxu0 0.0
    %221 = vmatpush1.xpose.msra.mxu0 0.0
    %222 = vmatprep.subr.mxu0 0.0
    %223 = vmatpush1.xpose.msra.mxu0 0.0
    %224 = vmatprep.subr.mxu0 0.0
    %225 = vmatpush1.xpose.msra.mxu0 0.0
    %226 = vmatprep.subr.mxu0 0.0
    %227 = vmatpush1.xpose.msra.mxu0 0.0
    %228 = vmatprep.subr.mxu0 0.0
    %229 = vmatpush1.xpose.msra.mxu0 0.0
    %230 = vmatprep.subr.mxu0 0.0
    %231 = vmatpush1.xpose.msra.mxu0 0.0
    %232 = vmatprep.subr.mxu0 0.0
    %233 = vmatpush1.xpose.msra.mxu0 0.0
    %234 = vmatprep.subr.mxu0 0.0
    %235 = vmatpush1.xpose.msra.mxu0 0.0
    %236 = vmatprep.subr.mxu0 0.0
    %237 = vmatpush1.xpose.msra.mxu0 0.0
    %238 = vmatprep.subr.mxu0 0.0
    %239 = vmatpush1.xpose.msra.mxu0 0.0
    %240 = vmatprep.subr.mxu0 0.0
    %241 = vmatpush1.xpose.msra.mxu0 0.0
    %242 = vmatprep.subr.mxu0 0.0
    %243 = vmatpush1.xpose.msra.mxu0 0.0
    %244 = vmatprep.subr.mxu0 0.0
    %245 = vmatpush1.xpose.msra.mxu0 0.0
    %246 = vmatprep.subr.mxu0 0.0
    %247 = vmatpush1.xpose.msra.mxu0 0.0
    %248 = vmatprep.subr.mxu0 0.0
    %249 = vmatpush1.xpose.msra.mxu0 0.0
    %250 = vmatprep.subr.mxu0 0.0
    %251 = vmatpush1.xpose.msra.mxu0 0.0
    %252 = vmatprep.subr.mxu0 0.0
    %253 = vmatpush1.xpose.msra.mxu0 0.0
    %254 = vmatprep.subr.mxu0 0.0
    %255 = vmatpush1.xpose.msra.mxu0 0.0
    %256 = vmatprep.subr.mxu0 0.0
    %257 = vmatpush1.xpose.msra.mxu0 0.0
    %258 = vmatprep.subr.mxu0 0.0
    %259 = vmatpush1.xpose.msra.mxu0 0.0
    %260 = vmatprep.subr.mxu0 0.0
    %261 = vmatpush1.xpose.msra.mxu0 0.0
    %262 = vmatprep.subr.mxu0 0.0
    %263 = vmatpush1.xpose.msra.mxu0 0.0
    %264 = vmatprep.subr.mxu0 0.0
    %265 = vmatpush1.xpose.msra.mxu0 0.0
    %266 = vmatprep.mubr.f32.mxu0 0.0
    %267 = vmatmul.mubr.f32.gmra.mrb[0].mxu0 %v116
    %v268 = vpop.f32.mrb[0].mxu0
    %v269 = vadd.f32 0.0, %v268
    %v270 = vpop.f32.mrb[0].mxu0
    %271 = vmatprep.mubr.f32.mxu0 0.0
    %272 = vmatmul.mubr.f32.gmra.mrb[0].mxu0 %v119
    %v273 = vpop.f32.mrb[0].mxu0
    %v274 = vadd.f32 0.0, %v273
    %v275 = vpop.f32.mrb[0].mxu0
    %276 = vdwg.mxu0
    %v278 = vsel %vm41, %v113, 0
    %280 = vmatprep.subr.mxu0 0.0
    %281 = vmatpush1.xpose.msra.mxu0 %v278
    %282 = vmatprep.subr.mxu0 0.0
    %283 = vmatpush1.xpose.msra.mxu0 0.0
    %284 = vmatprep.subr.mxu0 0.0
    %285 = vmatpush1.xpose.msra.mxu0 0.0
    %286 = vmatprep.subr.mxu0 0.0
    %287 = vmatpush1.xpose.msra.mxu0 0.0
    %288 = vmatprep.subr.mxu0 0.0
    %289 = vmatpush1.xpose.msra.mxu0 0.0
    %290 = vmatprep.subr.mxu0 0.0
    %291 = vmatpush1.xpose.msra.mxu0 0.0
    %292 = vmatprep.subr.mxu0 0.0
    %293 = vmatpush1.xpose.msra.mxu0 0.0
    %294 = vmatprep.subr.mxu0 0.0
    %295 = vmatpush1.xpose.msra.mxu0 0.0
    %296 = vmatprep.subr.mxu0 0.0
    %297 = vmatpush1.xpose.msra.mxu0 0.0
    %298 = vmatprep.subr.mxu0 0.0
    %299 = vmatpush1.xpose.msra.mxu0 0.0
    %300 = vmatprep.subr.mxu0 0.0
    %301 = vmatpush1.xpose.msra.mxu0 0.0
    %302 = vmatprep.subr.mxu0 0.0
    %303 = vmatpush1.xpose.msra.mxu0 0.0
    %304 = vmatprep.subr.mxu0 0.0
    %305 = vmatpush1.xpose.msra.mxu0 0.0
    %306 = vmatprep.subr.mxu0 0.0
    %307 = vmatpush1.xpose.msra.mxu0 0.0
    %308 = vmatprep.subr.mxu0 0.0
    %309 = vmatpush1.xpose.msra.mxu0 0.0
    %310 = vmatprep.subr.mxu0 0.0
    %311 = vmatpush1.xpose.msra.mxu0 0.0
    %312 = vmatprep.subr.mxu0 0.0
    %313 = vmatpush1.xpose.msra.mxu0 0.0
    %314 = vmatprep.subr.mxu0 0.0
    %315 = vmatpush1.xpose.msra.mxu0 0.0
    %316 = vmatprep.subr.mxu0 0.0
    %317 = vmatpush1.xpose.msra.mxu0 0.0
    %318 = vmatprep.subr.mxu0 0.0
    %319 = vmatpush1.xpose.msra.mxu0 0.0
    %320 = vmatprep.subr.mxu0 0.0
    %321 = vmatpush1.xpose.msra.mxu0 0.0
    %322 = vmatprep.subr.mxu0 0.0
    %323 = vmatpush1.xpose.msra.mxu0 0.0
    %324 = vmatprep.subr.mxu0 0.0
    %325 = vmatpush1.xpose.msra.mxu0 0.0
    %326 = vmatprep.subr.mxu0 0.0
    %327 = vmatpush1.xpose.msra.mxu0 0.0
    %328 = vmatprep.subr.mxu0 0.0
    %329 = vmatpush1.xpose.msra.mxu0 0.0
    %330 = vmatprep.subr.mxu0 0.0
    %331 = vmatpush1.xpose.msra.mxu0 0.0
    %332 = vmatprep.subr.mxu0 0.0
    %333 = vmatpush1.xpose.msra.mxu0 0.0
    %334 = vmatprep.subr.mxu0 0.0
    %335 = vmatpush1.xpose.msra.mxu0 0.0
    %336 = vmatprep.subr.mxu0 0.0
    %337 = vmatpush1.xpose.msra.mxu0 0.0
    %338 = vmatprep.subr.mxu0 0.0
    %339 = vmatpush1.xpose.msra.mxu0 0.0
    %340 = vmatprep.subr.mxu0 0.0
    %341 = vmatpush1.xpose.msra.mxu0 0.0
    %342 = vmatprep.subr.mxu0 0.0
    %343 = vmatpush1.xpose.msra.mxu0 0.0
    %344 = vmatprep.mubr.f32.mxu0 0.0
    %345 = vmatmul.mubr.f32.gmra.mrb[0].mxu0 %v116
    %v346 = vpop.f32.mrb[0].mxu0
    %v347 = vadd.f32 0.0, %v346
    %v348 = vpop.f32.mrb[0].mxu0
    %349 = vmatprep.mubr.f32.mxu0 0.0
    %350 = vmatmul.mubr.f32.gmra.mrb[0].mxu0 %v119
    %v351 = vpop.f32.mrb[0].mxu0
    %v352 = vadd.f32 0.0, %v351
    %v353 = vpop.f32.mrb[0].mxu0
    %354 = vdwg.mxu0
    %v356 = vsel %vm41, %v114, 0
    %358 = vmatprep.subr.mxu0 0.0
    %359 = vmatpush1.xpose.msra.mxu0 %v356
    %360 = vmatprep.subr.mxu0 0.0
    %361 = vmatpush1.xpose.msra.mxu0 0.0
    %362 = vmatprep.subr.mxu0 0.0
    %363 = vmatpush1.xpose.msra.mxu0 0.0
    %364 = vmatprep.subr.mxu0 0.0
    %365 = vmatpush1.xpose.msra.mxu0 0.0
    %366 = vmatprep.subr.mxu0 0.0
    %367 = vmatpush1.xpose.msra.mxu0 0.0
    %368 = vmatprep.subr.mxu0 0.0
    %369 = vmatpush1.xpose.msra.mxu0 0.0
    %370 = vmatprep.subr.mxu0 0.0
    %371 = vmatpush1.xpose.msra.mxu0 0.0
    %372 = vmatprep.subr.mxu0 0.0
    %373 = vmatpush1.xpose.msra.mxu0 0.0
    %374 = vmatprep.subr.mxu0 0.0
    %375 = vmatpush1.xpose.msra.mxu0 0.0
    %376 = vmatprep.subr.mxu0 0.0
    %377 = vmatpush1.xpose.msra.mxu0 0.0
    %378 = vmatprep.subr.mxu0 0.0
    %379 = vmatpush1.xpose.msra.mxu0 0.0
    %380 = vmatprep.subr.mxu0 0.0
    %381 = vmatpush1.xpose.msra.mxu0 0.0
    %382 = vmatprep.subr.mxu0 0.0
    %383 = vmatpush1.xpose.msra.mxu0 0.0
    %384 = vmatprep.subr.mxu0 0.0
    %385 = vmatpush1.xpose.msra.mxu0 0.0
    %386 = vmatprep.subr.mxu0 0.0
    %387 = vmatpush1.xpose.msra.mxu0 0.0
    %388 = vmatprep.subr.mxu0 0.0
    %389 = vmatpush1.xpose.msra.mxu0 0.0
    %390 = vmatprep.subr.mxu0 0.0
    %391 = vmatpush1.xpose.msra.mxu0 0.0
    %392 = vmatprep.subr.mxu0 0.0
    %393 = vmatpush1.xpose.msra.mxu0 0.0
    %394 = vmatprep.subr.mxu0 0.0
    %395 = vmatpush1.xpose.msra.mxu0 0.0
    %396 = vmatprep.subr.mxu0 0.0
    %397 = vmatpush1.xpose.msra.mxu0 0.0
    %398 = vmatprep.subr.mxu0 0.0
    %399 = vmatpush1.xpose.msra.mxu0 0.0
    %400 = vmatprep.subr.mxu0 0.0
    %401 = vmatpush1.xpose.msra.mxu0 0.0
    %402 = vmatprep.subr.mxu0 0.0
    %403 = vmatpush1.xpose.msra.mxu0 0.0
    %404 = vmatprep.subr.mxu0 0.0
    %405 = vmatpush1.xpose.msra.mxu0 0.0
    %406 = vmatprep.subr.mxu0 0.0
    %407 = vmatpush1.xpose.msra.mxu0 0.0
    %408 = vmatprep.subr.mxu0 0.0
    %409 = vmatpush1.xpose.msra.mxu0 0.0
    %410 = vmatprep.subr.mxu0 0.0
    %411 = vmatpush1.xpose.msra.mxu0 0.0
    %412 = vmatprep.subr.mxu0 0.0
    %413 = vmatpush1.xpose.msra.mxu0 0.0
    %414 = vmatprep.subr.mxu0 0.0
    %415 = vmatpush1.xpose.msra.mxu0 0.0
    %416 = vmatprep.subr.mxu0 0.0
    %417 = vmatpush1.xpose.msra.mxu0 0.0
    %418 = vmatprep.subr.mxu0 0.0
    %419 = vmatpush1.xpose.msra.mxu0 0.0
    %420 = vmatprep.subr.mxu0 0.0
    %421 = vmatpush1.xpose.msra.mxu0 0.0
    %422 = vmatprep.mubr.f32.mxu0 0.0
    %423 = vmatmul.mubr.f32.gmra.mrb[0].mxu0 %v116
    %v424 = vpop.f32.mrb[0].mxu0
    %v425 = vadd.f32 0.0, %v424
    %v426 = vpop.f32.mrb[0].mxu0
    %427 = vmatprep.mubr.f32.mxu0 0.0
    %428 = vmatmul.mubr.f32.gmra.mrb[0].mxu0 %v119
    %v429 = vpop.f32.mrb[0].mxu0
    %v430 = vadd.f32 0.0, %v429
    %v431 = vpop.f32.mrb[0].mxu0
    %432 = vdwg.mxu0
    %v433 = vmul.f32 %v191, 0.35355338
    %v434 = vmul.f32 %v196, 0.35355338
    %v435 = vmul.f32 %v269, 0.35355338
    %v436 = vmul.f32 %v274, 0.35355338
    %v437 = vmul.f32 %v347, 0.35355338
    %v438 = vmul.f32 %v352, 0.35355338
    %v439 = vmul.f32 %v425, 0.35355338
    %v440 = vmul.f32 %v430, 0.35355338
    %s441 = scalar_lea.vmem %s2, 32
    %v442 = vld [vmem:[%s441] sm:$0xff]
    %v443 = vld [vmem:[%s441 + $0x8] sm:$0xff]
    %v444 = vld [vmem:[%s441 + $0x10] sm:$0xff]
    %v445 = vld [vmem:[%s441 + $0x18] sm:$0xff]
    %v447 = vsel %vm41, %v109, 0
    %v450 = vsel %vm41, %v110, 0
    %v453 = vsel %vm41, %v442, 0
    %455 = vmatprep.subr.mxu0 0.0
    %456 = vmatpush1.xpose.msra.mxu0 %v453
    %457 = vmatprep.subr.mxu0 0.0
    %458 = vmatpush1.xpose.msra.mxu0 0.0
    %459 = vmatprep.subr.mxu0 0.0
    %460 = vmatpush1.xpose.msra.mxu0 0.0
    %461 = vmatprep.subr.mxu0 0.0
    %462 = vmatpush1.xpose.msra.mxu0 0.0
    %463 = vmatprep.subr.mxu0 0.0
    %464 = vmatpush1.xpose.msra.mxu0 0.0
    %465 = vmatprep.subr.mxu0 0.0
    %466 = vmatpush1.xpose.msra.mxu0 0.0
    %467 = vmatprep.subr.mxu0 0.0
    %468 = vmatpush1.xpose.msra.mxu0 0.0
    %469 = vmatprep.subr.mxu0 0.0
    %470 = vmatpush1.xpose.msra.mxu0 0.0
    %471 = vmatprep.subr.mxu0 0.0
    %472 = vmatpush1.xpose.msra.mxu0 0.0
    %473 = vmatprep.subr.mxu0 0.0
    %474 = vmatpush1.xpose.msra.mxu0 0.0
    %475 = vmatprep.subr.mxu0 0.0
    %476 = vmatpush1.xpose.msra.mxu0 0.0
    %477 = vmatprep.subr.mxu0 0.0
    %478 = vmatpush1.xpose.msra.mxu0 0.0
    %479 = vmatprep.subr.mxu0 0.0
    %480 = vmatpush1.xpose.msra.mxu0 0.0
    %481 = vmatprep.subr.mxu0 0.0
    %482 = vmatpush1.xpose.msra.mxu0 0.0
    %483 = vmatprep.subr.mxu0 0.0
    %484 = vmatpush1.xpose.msra.mxu0 0.0
    %485 = vmatprep.subr.mxu0 0.0
    %486 = vmatpush1.xpose.msra.mxu0 0.0
    %487 = vmatprep.subr.mxu0 0.0
    %488 = vmatpush1.xpose.msra.mxu0 0.0
    %489 = vmatprep.subr.mxu0 0.0
    %490 = vmatpush1.xpose.msra.mxu0 0.0
    %491 = vmatprep.subr.mxu0 0.0
    %492 = vmatpush1.xpose.msra.mxu0 0.0
    %493 = vmatprep.subr.mxu0 0.0
    %494 = vmatpush1.xpose.msra.mxu0 0.0
    %495 = vmatprep.subr.mxu0 0.0
    %496 = vmatpush1.xpose.msra.mxu0 0.0
    %497 = vmatprep.subr.mxu0 0.0
    %498 = vmatpush1.xpose.msra.mxu0 0.0
    %499 = vmatprep.subr.mxu0 0.0
    %500 = vmatpush1.xpose.msra.mxu0 0.0
    %501 = vmatprep.subr.mxu0 0.0
    %502 = vmatpush1.xpose.msra.mxu0 0.0
    %503 = vmatprep.subr.mxu0 0.0
    %504 = vmatpush1.xpose.msra.mxu0 0.0
    %505 = vmatprep.subr.mxu0 0.0
    %506 = vmatpush1.xpose.msra.mxu0 0.0
    %507 = vmatprep.subr.mxu0 0.0
    %508 = vmatpush1.xpose.msra.mxu0 0.0
    %509 = vmatprep.subr.mxu0 0.0
    %510 = vmatpush1.xpose.msra.mxu0 0.0
    %511 = vmatprep.subr.mxu0 0.0
    %512 = vmatpush1.xpose.msra.mxu0 0.0
    %513 = vmatprep.subr.mxu0 0.0
    %514 = vmatpush1.xpose.msra.mxu0 0.0
    %515 = vmatprep.subr.mxu0 0.0
    %516 = vmatpush1.xpose.msra.mxu0 0.0
    %517 = vmatprep.subr.mxu0 0.0
    %518 = vmatpush1.xpose.msra.mxu0 0.0
    %519 = vmatprep.mubr.f32.mxu0 0.0
    %520 = vmatmul.mubr.f32.gmra.mrb[0].mxu0 %v447
    %v521 = vpop.f32.mrb[0].mxu0
    %v522 = vadd.f32 0.0, %v521
    %v523 = vpop.f32.mrb[0].mxu0
    %524 = vmatprep.mubr.f32.mxu0 0.0
    %525 = vmatmul.mubr.f32.gmra.mrb[0].mxu0 %v450
    %v526 = vpop.f32.mrb[0].mxu0
    %v527 = vadd.f32 0.0, %v526
    %v528 = vpop.f32.mrb[0].mxu0
    %529 = vdwg.mxu0
    %v531 = vsel %vm41, %v443, 0
    %533 = vmatprep.subr.mxu0 0.0
    %534 = vmatpush1.xpose.msra.mxu0 %v531
    %535 = vmatprep.subr.mxu0 0.0
    %536 = vmatpush1.xpose.msra.mxu0 0.0
    %537 = vmatprep.subr.mxu0 0.0
    %538 = vmatpush1.xpose.msra.mxu0 0.0
    %539 = vmatprep.subr.mxu0 0.0
    %540 = vmatpush1.xpose.msra.mxu0 0.0
    %541 = vmatprep.subr.mxu0 0.0
    %542 = vmatpush1.xpose.msra.mxu0 0.0
    %543 = vmatprep.subr.mxu0 0.0
    %544 = vmatpush1.xpose.msra.mxu0 0.0
    %545 = vmatprep.subr.mxu0 0.0
    %546 = vmatpush1.xpose.msra.mxu0 0.0
    %547 = vmatprep.subr.mxu0 0.0
    %548 = vmatpush1.xpose.msra.mxu0 0.0
    %549 = vmatprep.subr.mxu0 0.0
    %550 = vmatpush1.xpose.msra.mxu0 0.0
    %551 = vmatprep.subr.mxu0 0.0
    %552 = vmatpush1.xpose.msra.mxu0 0.0
    %553 = vmatprep.subr.mxu0 0.0
    %554 = vmatpush1.xpose.msra.mxu0 0.0
    %555 = vmatprep.subr.mxu0 0.0
    %556 = vmatpush1.xpose.msra.mxu0 0.0
    %557 = vmatprep.subr.mxu0 0.0
    %558 = vmatpush1.xpose.msra.mxu0 0.0
    %559 = vmatprep.subr.mxu0 0.0
    %560 = vmatpush1.xpose.msra.mxu0 0.0
    %561 = vmatprep.subr.mxu0 0.0
    %562 = vmatpush1.xpose.msra.mxu0 0.0
    %563 = vmatprep.subr.mxu0 0.0
    %564 = vmatpush1.xpose.msra.mxu0 0.0
    %565 = vmatprep.subr.mxu0 0.0
    %566 = vmatpush1.xpose.msra.mxu0 0.0
    %567 = vmatprep.subr.mxu0 0.0
    %568 = vmatpush1.xpose.msra.mxu0 0.0
    %569 = vmatprep.subr.mxu0 0.0
    %570 = vmatpush1.xpose.msra.mxu0 0.0
    %571 = vmatprep.subr.mxu0 0.0
    %572 = vmatpush1.xpose.msra.mxu0 0.0
    %573 = vmatprep.subr.mxu0 0.0
    %574 = vmatpush1.xpose.msra.mxu0 0.0
    %575 = vmatprep.subr.mxu0 0.0
    %576 = vmatpush1.xpose.msra.mxu0 0.0
    %577 = vmatprep.subr.mxu0 0.0
    %578 = vmatpush1.xpose.msra.mxu0 0.0
    %579 = vmatprep.subr.mxu0 0.0
    %580 = vmatpush1.xpose.msra.mxu0 0.0
    %581 = vmatprep.subr.mxu0 0.0
    %582 = vmatpush1.xpose.msra.mxu0 0.0
    %583 = vmatprep.subr.mxu0 0.0
    %584 = vmatpush1.xpose.msra.mxu0 0.0
    %585 = vmatprep.subr.mxu0 0.0
    %586 = vmatpush1.xpose.msra.mxu0 0.0
    %587 = vmatprep.subr.mxu0 0.0
    %588 = vmatpush1.xpose.msra.mxu0 0.0
    %589 = vmatprep.subr.mxu0 0.0
    %590 = vmatpush1.xpose.msra.mxu0 0.0
    %591 = vmatprep.subr.mxu0 0.0
    %592 = vmatpush1.xpose.msra.mxu0 0.0
    %593 = vmatprep.subr.mxu0 0.0
    %594 = vmatpush1.xpose.msra.mxu0 0.0
    %595 = vmatprep.subr.mxu0 0.0
    %596 = vmatpush1.xpose.msra.mxu0 0.0
    %597 = vmatprep.mubr.f32.mxu0 0.0
    %598 = vmatmul.mubr.f32.gmra.mrb[0].mxu0 %v447
    %v599 = vpop.f32.mrb[0].mxu0
    %v600 = vadd.f32 0.0, %v599
    %v601 = vpop.f32.mrb[0].mxu0
    %602 = vmatprep.mubr.f32.mxu0 0.0
    %603 = vmatmul.mubr.f32.gmra.mrb[0].mxu0 %v450
    %v604 = vpop.f32.mrb[0].mxu0
    %v605 = vadd.f32 0.0, %v604
    %v606 = vpop.f32.mrb[0].mxu0
    %607 = vdwg.mxu0
    %v609 = vsel %vm41, %v444, 0
    %611 = vmatprep.subr.mxu0 0.0
    %612 = vmatpush1.xpose.msra.mxu0 %v609
    %613 = vmatprep.subr.mxu0 0.0
    %614 = vmatpush1.xpose.msra.mxu0 0.0
    %615 = vmatprep.subr.mxu0 0.0
    %616 = vmatpush1.xpose.msra.mxu0 0.0
    %617 = vmatprep.subr.mxu0 0.0
    %618 = vmatpush1.xpose.msra.mxu0 0.0
    %619 = vmatprep.subr.mxu0 0.0
    %620 = vmatpush1.xpose.msra.mxu0 0.0
    %621 = vmatprep.subr.mxu0 0.0
    %622 = vmatpush1.xpose.msra.mxu0 0.0
    %623 = vmatprep.subr.mxu0 0.0
    %624 = vmatpush1.xpose.msra.mxu0 0.0
    %625 = vmatprep.subr.mxu0 0.0
    %626 = vmatpush1.xpose.msra.mxu0 0.0
    %627 = vmatprep.subr.mxu0 0.0
    %628 = vmatpush1.xpose.msra.mxu0 0.0
    %629 = vmatprep.subr.mxu0 0.0
    %630 = vmatpush1.xpose.msra.mxu0 0.0
    %631 = vmatprep.subr.mxu0 0.0
    %632 = vmatpush1.xpose.msra.mxu0 0.0
    %633 = vmatprep.subr.mxu0 0.0
    %634 = vmatpush1.xpose.msra.mxu0 0.0
    %635 = vmatprep.subr.mxu0 0.0
    %636 = vmatpush1.xpose.msra.mxu0 0.0
    %637 = vmatprep.subr.mxu0 0.0
    %638 = vmatpush1.xpose.msra.mxu0 0.0
    %639 = vmatprep.subr.mxu0 0.0
    %640 = vmatpush1.xpose.msra.mxu0 0.0
    %641 = vmatprep.subr.mxu0 0.0
    %642 = vmatpush1.xpose.msra.mxu0 0.0
    %643 = vmatprep.subr.mxu0 0.0
    %644 = vmatpush1.xpose.msra.mxu0 0.0
    %645 = vmatprep.subr.mxu0 0.0
    %646 = vmatpush1.xpose.msra.mxu0 0.0
    %647 = vmatprep.subr.mxu0 0.0
    %648 = vmatpush1.xpose.msra.mxu0 0.0
    %649 = vmatprep.subr.mxu0 0.0
    %650 = vmatpush1.xpose.msra.mxu0 0.0
    %651 = vmatprep.subr.mxu0 0.0
    %652 = vmatpush1.xpose.msra.mxu0 0.0
    %653 = vmatprep.subr.mxu0 0.0
    %654 = vmatpush1.xpose.msra.mxu0 0.0
    %655 = vmatprep.subr.mxu0 0.0
    %656 = vmatpush1.xpose.msra.mxu0 0.0
    %657 = vmatprep.subr.mxu0 0.0
    %658 = vmatpush1.xpose.msra.mxu0 0.0
    %659 = vmatprep.subr.mxu0 0.0
    %660 = vmatpush1.xpose.msra.mxu0 0.0
    %661 = vmatprep.subr.mxu0 0.0
    %662 = vmatpush1.xpose.msra.mxu0 0.0
    %663 = vmatprep.subr.mxu0 0.0
    %664 = vmatpush1.xpose.msra.mxu0 0.0
    %665 = vmatprep.subr.mxu0 0.0
    %666 = vmatpush1.xpose.msra.mxu0 0.0
    %667 = vmatprep.subr.mxu0 0.0
    %668 = vmatpush1.xpose.msra.mxu0 0.0
    %669 = vmatprep.subr.mxu0 0.0
    %670 = vmatpush1.xpose.msra.mxu0 0.0
    %671 = vmatprep.subr.mxu0 0.0
    %672 = vmatpush1.xpose.msra.mxu0 0.0
    %673 = vmatprep.subr.mxu0 0.0
    %674 = vmatpush1.xpose.msra.mxu0 0.0
    %675 = vmatprep.mubr.f32.mxu0 0.0
    %676 = vmatmul.mubr.f32.gmra.mrb[0].mxu0 %v447
    %v677 = vpop.f32.mrb[0].mxu0
    %v678 = vadd.f32 0.0, %v677
    %v679 = vpop.f32.mrb[0].mxu0
    %680 = vmatprep.mubr.f32.mxu0 0.0
    %681 = vmatmul.mubr.f32.gmra.mrb[0].mxu0 %v450
    %v682 = vpop.f32.mrb[0].mxu0
    %v683 = vadd.f32 0.0, %v682
    %v684 = vpop.f32.mrb[0].mxu0
    %685 = vdwg.mxu0
    %v687 = vsel %vm41, %v445, 0
    %689 = vmatprep.subr.mxu0 0.0
    %690 = vmatpush1.xpose.msra.mxu0 %v687
    %691 = vmatprep.subr.mxu0 0.0
    %692 = vmatpush1.xpose.msra.mxu0 0.0
    %693 = vmatprep.subr.mxu0 0.0
    %694 = vmatpush1.xpose.msra.mxu0 0.0
    %695 = vmatprep.subr.mxu0 0.0
    %696 = vmatpush1.xpose.msra.mxu0 0.0
    %697 = vmatprep.subr.mxu0 0.0
    %698 = vmatpush1.xpose.msra.mxu0 0.0
    %699 = vmatprep.subr.mxu0 0.0
    %700 = vmatpush1.xpose.msra.mxu0 0.0
    %701 = vmatprep.subr.mxu0 0.0
    %702 = vmatpush1.xpose.msra.mxu0 0.0
    %703 = vmatprep.subr.mxu0 0.0
    %704 = vmatpush1.xpose.msra.mxu0 0.0
    %705 = vmatprep.subr.mxu0 0.0
    %706 = vmatpush1.xpose.msra.mxu0 0.0
    %707 = vmatprep.subr.mxu0 0.0
    %708 = vmatpush1.xpose.msra.mxu0 0.0
    %709 = vmatprep.subr.mxu0 0.0
    %710 = vmatpush1.xpose.msra.mxu0 0.0
    %711 = vmatprep.subr.mxu0 0.0
    %712 = vmatpush1.xpose.msra.mxu0 0.0
    %713 = vmatprep.subr.mxu0 0.0
    %714 = vmatpush1.xpose.msra.mxu0 0.0
    %715 = vmatprep.subr.mxu0 0.0
    %716 = vmatpush1.xpose.msra.mxu0 0.0
    %717 = vmatprep.subr.mxu0 0.0
    %718 = vmatpush1.xpose.msra.mxu0 0.0
    %719 = vmatprep.subr.mxu0 0.0
    %720 = vmatpush1.xpose.msra.mxu0 0.0
    %721 = vmatprep.subr.mxu0 0.0
    %722 = vmatpush1.xpose.msra.mxu0 0.0
    %723 = vmatprep.subr.mxu0 0.0
    %724 = vmatpush1.xpose.msra.mxu0 0.0
    %725 = vmatprep.subr.mxu0 0.0
    %726 = vmatpush1.xpose.msra.mxu0 0.0
    %727 = vmatprep.subr.mxu0 0.0
    %728 = vmatpush1.xpose.msra.mxu0 0.0
    %729 = vmatprep.subr.mxu0 0.0
    %730 = vmatpush1.xpose.msra.mxu0 0.0
    %731 = vmatprep.subr.mxu0 0.0
    %732 = vmatpush1.xpose.msra.mxu0 0.0
    %733 = vmatprep.subr.mxu0 0.0
    %734 = vmatpush1.xpose.msra.mxu0 0.0
    %735 = vmatprep.subr.mxu0 0.0
    %736 = vmatpush1.xpose.msra.mxu0 0.0
    %737 = vmatprep.subr.mxu0 0.0
    %738 = vmatpush1.xpose.msra.mxu0 0.0
    %739 = vmatprep.subr.mxu0 0.0
    %740 = vmatpush1.xpose.msra.mxu0 0.0
    %741 = vmatprep.subr.mxu0 0.0
    %742 = vmatpush1.xpose.msra.mxu0 0.0
    %743 = vmatprep.subr.mxu0 0.0
    %744 = vmatpush1.xpose.msra.mxu0 0.0
    %745 = vmatprep.subr.mxu0 0.0
    %746 = vmatpush1.xpose.msra.mxu0 0.0
    %747 = vmatprep.subr.mxu0 0.0
    %748 = vmatpush1.xpose.msra.mxu0 0.0
    %749 = vmatprep.subr.mxu0 0.0
    %750 = vmatpush1.xpose.msra.mxu0 0.0
    %751 = vmatprep.subr.mxu0 0.0
    %752 = vmatpush1.xpose.msra.mxu0 0.0
    %753 = vmatprep.mubr.f32.mxu0 0.0
    %754 = vmatmul.mubr.f32.gmra.mrb[0].mxu0 %v447
    %v755 = vpop.f32.mrb[0].mxu0
    %v756 = vadd.f32 0.0, %v755
    %v757 = vpop.f32.mrb[0].mxu0
    %758 = vmatprep.mubr.f32.mxu0 0.0
    %759 = vmatmul.mubr.f32.gmra.mrb[0].mxu0 %v450
    %v760 = vpop.f32.mrb[0].mxu0
    %v761 = vadd.f32 0.0, %v760
    %v762 = vpop.f32.mrb[0].mxu0
    %763 = vdwg.mxu0
    %s764 = scalar_lea.vmem %s2, 64
    %v765 = vld [vmem:[%s764] sm:$0xff]
    %v766 = vld [vmem:[%s764 + $0x8] sm:$0xff]
    %v767 = vld [vmem:[%s764 + $0x10] sm:$0xff]
    %v768 = vld [vmem:[%s764 + $0x18] sm:$0xff]
    %v770 = vsel %vm41, %v765, 0
    %772 = vmatprep.subr.mxu0 0.0
    %773 = vmatpush1.xpose.msra.mxu0 %v770
    %774 = vmatprep.subr.mxu0 0.0
    %775 = vmatpush1.xpose.msra.mxu0 0.0
    %776 = vmatprep.subr.mxu0 0.0
    %777 = vmatpush1.xpose.msra.mxu0 0.0
    %778 = vmatprep.subr.mxu0 0.0
    %779 = vmatpush1.xpose.msra.mxu0 0.0
    %780 = vmatprep.subr.mxu0 0.0
    %781 = vmatpush1.xpose.msra.mxu0 0.0
    %782 = vmatprep.subr.mxu0 0.0
    %783 = vmatpush1.xpose.msra.mxu0 0.0
    %784 = vmatprep.subr.mxu0 0.0
    %785 = vmatpush1.xpose.msra.mxu0 0.0
    %786 = vmatprep.subr.mxu0 0.0
    %787 = vmatpush1.xpose.msra.mxu0 0.0
    %788 = vmatprep.subr.mxu0 0.0
    %789 = vmatpush1.xpose.msra.mxu0 0.0
    %790 = vmatprep.subr.mxu0 0.0
    %791 = vmatpush1.xpose.msra.mxu0 0.0
    %792 = vmatprep.subr.mxu0 0.0
    %793 = vmatpush1.xpose.msra.mxu0 0.0
    %794 = vmatprep.subr.mxu0 0.0
    %795 = vmatpush1.xpose.msra.mxu0 0.0
    %796 = vmatprep.subr.mxu0 0.0
    %797 = vmatpush1.xpose.msra.mxu0 0.0
    %798 = vmatprep.subr.mxu0 0.0
    %799 = vmatpush1.xpose.msra.mxu0 0.0
    %800 = vmatprep.subr.mxu0 0.0
    %801 = vmatpush1.xpose.msra.mxu0 0.0
    %802 = vmatprep.subr.mxu0 0.0
    %803 = vmatpush1.xpose.msra.mxu0 0.0
    %804 = vmatprep.subr.mxu0 0.0
    %805 = vmatpush1.xpose.msra.mxu0 0.0
    %806 = vmatprep.subr.mxu0 0.0
    %807 = vmatpush1.xpose.msra.mxu0 0.0
    %808 = vmatprep.subr.mxu0 0.0
    %809 = vmatpush1.xpose.msra.mxu0 0.0
    %810 = vmatprep.subr.mxu0 0.0
    %811 = vmatpush1.xpose.msra.mxu0 0.0
    %812 = vmatprep.subr.mxu0 0.0
    %813 = vmatpush1.xpose.msra.mxu0 0.0
    %814 = vmatprep.subr.mxu0 0.0
    %815 = vmatpush1.xpose.msra.mxu0 0.0
    %816 = vmatprep.subr.mxu0 0.0
    %817 = vmatpush1.xpose.msra.mxu0 0.0
    %818 = vmatprep.subr.mxu0 0.0
    %819 = vmatpush1.xpose.msra.mxu0 0.0
    %820 = vmatprep.subr.mxu0 0.0
    %821 = vmatpush1.xpose.msra.mxu0 0.0
    %822 = vmatprep.subr.mxu0 0.0
    %823 = vmatpush1.xpose.msra.mxu0 0.0
    %824 = vmatprep.subr.mxu0 0.0
    %825 = vmatpush1.xpose.msra.mxu0 0.0
    %826 = vmatprep.subr.mxu0 0.0
    %827 = vmatpush1.xpose.msra.mxu0 0.0
    %828 = vmatprep.subr.mxu0 0.0
    %829 = vmatpush1.xpose.msra.mxu0 0.0
    %830 = vmatprep.subr.mxu0 0.0
    %831 = vmatpush1.xpose.msra.mxu0 0.0
    %832 = vmatprep.subr.mxu0 0.0
    %833 = vmatpush1.xpose.msra.mxu0 0.0
    %834 = vmatprep.subr.mxu0 0.0
    %835 = vmatpush1.xpose.msra.mxu0 0.0
    %836 = vmatprep.mubr.f32.mxu0 0.0
    %837 = vmatmul.mubr.f32.gmra.mrb[0].mxu0 %v447
    %v838 = vpop.f32.mrb[0].mxu0
    %v839 = vadd.f32 0.0, %v838
    %v840 = vpop.f32.mrb[0].mxu0
    %841 = vmatprep.mubr.f32.mxu0 0.0
    %842 = vmatmul.mubr.f32.gmra.mrb[0].mxu0 %v450
    %v843 = vpop.f32.mrb[0].mxu0
    %v844 = vadd.f32 0.0, %v843
    %v845 = vpop.f32.mrb[0].mxu0
    %846 = vdwg.mxu0
    %v848 = vsel %vm41, %v766, 0
    %850 = vmatprep.subr.mxu0 0.0
    %851 = vmatpush1.xpose.msra.mxu0 %v848
    %852 = vmatprep.subr.mxu0 0.0
    %853 = vmatpush1.xpose.msra.mxu0 0.0
    %854 = vmatprep.subr.mxu0 0.0
    %855 = vmatpush1.xpose.msra.mxu0 0.0
    %856 = vmatprep.subr.mxu0 0.0
    %857 = vmatpush1.xpose.msra.mxu0 0.0
    %858 = vmatprep.subr.mxu0 0.0
    %859 = vmatpush1.xpose.msra.mxu0 0.0
    %860 = vmatprep.subr.mxu0 0.0
    %861 = vmatpush1.xpose.msra.mxu0 0.0
    %862 = vmatprep.subr.mxu0 0.0
    %863 = vmatpush1.xpose.msra.mxu0 0.0
    %864 = vmatprep.subr.mxu0 0.0
    %865 = vmatpush1.xpose.msra.mxu0 0.0
    %866 = vmatprep.subr.mxu0 0.0
    %867 = vmatpush1.xpose.msra.mxu0 0.0
    %868 = vmatprep.subr.mxu0 0.0
    %869 = vmatpush1.xpose.msra.mxu0 0.0
    %870 = vmatprep.subr.mxu0 0.0
    %871 = vmatpush1.xpose.msra.mxu0 0.0
    %872 = vmatprep.subr.mxu0 0.0
    %873 = vmatpush1.xpose.msra.mxu0 0.0
    %874 = vmatprep.subr.mxu0 0.0
    %875 = vmatpush1.xpose.msra.mxu0 0.0
    %876 = vmatprep.subr.mxu0 0.0
    %877 = vmatpush1.xpose.msra.mxu0 0.0
    %878 = vmatprep.subr.mxu0 0.0
    %879 = vmatpush1.xpose.msra.mxu0 0.0
    %880 = vmatprep.subr.mxu0 0.0
    %881 = vmatpush1.xpose.msra.mxu0 0.0
    %882 = vmatprep.subr.mxu0 0.0
    %883 = vmatpush1.xpose.msra.mxu0 0.0
    %884 = vmatprep.subr.mxu0 0.0
    %885 = vmatpush1.xpose.msra.mxu0 0.0
    %886 = vmatprep.subr.mxu0 0.0
    %887 = vmatpush1.xpose.msra.mxu0 0.0
    %888 = vmatprep.subr.mxu0 0.0
    %889 = vmatpush1.xpose.msra.mxu0 0.0
    %890 = vmatprep.subr.mxu0 0.0
    %891 = vmatpush1.xpose.msra.mxu0 0.0
    %892 = vmatprep.subr.mxu0 0.0
    %893 = vmatpush1.xpose.msra.mxu0 0.0
    %894 = vmatprep.subr.mxu0 0.0
    %895 = vmatpush1.xpose.msra.mxu0 0.0
    %896 = vmatprep.subr.mxu0 0.0
    %897 = vmatpush1.xpose.msra.mxu0 0.0
    %898 = vmatprep.subr.mxu0 0.0
    %899 = vmatpush1.xpose.msra.mxu0 0.0
    %900 = vmatprep.subr.mxu0 0.0
    %901 = vmatpush1.xpose.msra.mxu0 0.0
    %902 = vmatprep.subr.mxu0 0.0
    %903 = vmatpush1.xpose.msra.mxu0 0.0
    %904 = vmatprep.subr.mxu0 0.0
    %905 = vmatpush1.xpose.msra.mxu0 0.0
    %906 = vmatprep.subr.mxu0 0.0
    %907 = vmatpush1.xpose.msra.mxu0 0.0
    %908 = vmatprep.subr.mxu0 0.0
    %909 = vmatpush1.xpose.msra.mxu0 0.0
    %910 = vmatprep.subr.mxu0 0.0
    %911 = vmatpush1.xpose.msra.mxu0 0.0
    %912 = vmatprep.subr.mxu0 0.0
    %913 = vmatpush1.xpose.msra.mxu0 0.0
    %914 = vmatprep.mubr.f32.mxu0 0.0
    %915 = vmatmul.mubr.f32.gmra.mrb[0].mxu0 %v447
    %v916 = vpop.f32.mrb[0].mxu0
    %v917 = vadd.f32 0.0, %v916
    %v918 = vpop.f32.mrb[0].mxu0
    %919 = vmatprep.mubr.f32.mxu0 0.0
    %920 = vmatmul.mubr.f32.gmra.mrb[0].mxu0 %v450
    %v921 = vpop.f32.mrb[0].mxu0
    %v922 = vadd.f32 0.0, %v921
    %v923 = vpop.f32.mrb[0].mxu0
    %924 = vdwg.mxu0
    %v926 = vsel %vm41, %v767, 0
    %928 = vmatprep.subr.mxu0 0.0
    %929 = vmatpush1.xpose.msra.mxu0 %v926
    %930 = vmatprep.subr.mxu0 0.0
    %931 = vmatpush1.xpose.msra.mxu0 0.0
    %932 = vmatprep.subr.mxu0 0.0
    %933 = vmatpush1.xpose.msra.mxu0 0.0
    %934 = vmatprep.subr.mxu0 0.0
    %935 = vmatpush1.xpose.msra.mxu0 0.0
    %936 = vmatprep.subr.mxu0 0.0
    %937 = vmatpush1.xpose.msra.mxu0 0.0
    %938 = vmatprep.subr.mxu0 0.0
    %939 = vmatpush1.xpose.msra.mxu0 0.0
    %940 = vmatprep.subr.mxu0 0.0
    %941 = vmatpush1.xpose.msra.mxu0 0.0
    %942 = vmatprep.subr.mxu0 0.0
    %943 = vmatpush1.xpose.msra.mxu0 0.0
    %944 = vmatprep.subr.mxu0 0.0
    %945 = vmatpush1.xpose.msra.mxu0 0.0
    %946 = vmatprep.subr.mxu0 0.0
    %947 = vmatpush1.xpose.msra.mxu0 0.0
    %948 = vmatprep.subr.mxu0 0.0
    %949 = vmatpush1.xpose.msra.mxu0 0.0
    %950 = vmatprep.subr.mxu0 0.0
    %951 = vmatpush1.xpose.msra.mxu0 0.0
    %952 = vmatprep.subr.mxu0 0.0
    %953 = vmatpush1.xpose.msra.mxu0 0.0
    %954 = vmatprep.subr.mxu0 0.0
    %955 = vmatpush1.xpose.msra.mxu0 0.0
    %956 = vmatprep.subr.mxu0 0.0
    %957 = vmatpush1.xpose.msra.mxu0 0.0
    %958 = vmatprep.subr.mxu0 0.0
    %959 = vmatpush1.xpose.msra.mxu0 0.0
    %960 = vmatprep.subr.mxu0 0.0
    %961 = vmatpush1.xpose.msra.mxu0 0.0
    %962 = vmatprep.subr.mxu0 0.0
    %963 = vmatpush1.xpose.msra.mxu0 0.0
    %964 = vmatprep.subr.mxu0 0.0
    %965 = vmatpush1.xpose.msra.mxu0 0.0
    %966 = vmatprep.subr.mxu0 0.0
    %967 = vmatpush1.xpose.msra.mxu0 0.0
    %968 = vmatprep.subr.mxu0 0.0
    %969 = vmatpush1.xpose.msra.mxu0 0.0
    %970 = vmatprep.subr.mxu0 0.0
    %971 = vmatpush1.xpose.msra.mxu0 0.0
    %972 = vmatprep.subr.mxu0 0.0
    %973 = vmatpush1.xpose.msra.mxu0 0.0
    %974 = vmatprep.subr.mxu0 0.0
    %975 = vmatpush1.xpose.msra.mxu0 0.0
    %976 = vmatprep.subr.mxu0 0.0
    %977 = vmatpush1.xpose.msra.mxu0 0.0
    %978 = vmatprep.subr.mxu0 0.0
    %979 = vmatpush1.xpose.msra.mxu0 0.0
    %980 = vmatprep.subr.mxu0 0.0
    %981 = vmatpush1.xpose.msra.mxu0 0.0
    %982 = vmatprep.subr.mxu0 0.0
    %983 = vmatpush1.xpose.msra.mxu0 0.0
    %984 = vmatprep.subr.mxu0 0.0
    %985 = vmatpush1.xpose.msra.mxu0 0.0
    %986 = vmatprep.subr.mxu0 0.0
    %987 = vmatpush1.xpose.msra.mxu0 0.0
    %988 = vmatprep.subr.mxu0 0.0
    %989 = vmatpush1.xpose.msra.mxu0 0.0
    %990 = vmatprep.subr.mxu0 0.0
    %991 = vmatpush1.xpose.msra.mxu0 0.0
    %992 = vmatprep.mubr.f32.mxu0 0.0
    %993 = vmatmul.mubr.f32.gmra.mrb[0].mxu0 %v447
    %v994 = vpop.f32.mrb[0].mxu0
    %v995 = vadd.f32 0.0, %v994
    %v996 = vpop.f32.mrb[0].mxu0
    %997 = vmatprep.mubr.f32.mxu0 0.0
    %998 = vmatmul.mubr.f32.gmra.mrb[0].mxu0 %v450
    %v999 = vpop.f32.mrb[0].mxu0
    %v1000 = vadd.f32 0.0, %v999
    %v1001 = vpop.f32.mrb[0].mxu0
    %1002 = vdwg.mxu0
    %v1004 = vsel %vm41, %v768, 0
    %1006 = vmatprep.subr.mxu0 0.0
    %1007 = vmatpush1.xpose.msra.mxu0 %v1004
    %1008 = vmatprep.subr.mxu0 0.0
    %1009 = vmatpush1.xpose.msra.mxu0 0.0
    %1010 = vmatprep.subr.mxu0 0.0
    %1011 = vmatpush1.xpose.msra.mxu0 0.0
    %1012 = vmatprep.subr.mxu0 0.0
    %1013 = vmatpush1.xpose.msra.mxu0 0.0
    %1014 = vmatprep.subr.mxu0 0.0
    %1015 = vmatpush1.xpose.msra.mxu0 0.0
    %1016 = vmatprep.subr.mxu0 0.0
    %1017 = vmatpush1.xpose.msra.mxu0 0.0
    %1018 = vmatprep.subr.mxu0 0.0
    %1019 = vmatpush1.xpose.msra.mxu0 0.0
    %1020 = vmatprep.subr.mxu0 0.0
    %1021 = vmatpush1.xpose.msra.mxu0 0.0
    %1022 = vmatprep.subr.mxu0 0.0
    %1023 = vmatpush1.xpose.msra.mxu0 0.0
    %1024 = vmatprep.subr.mxu0 0.0
    %1025 = vmatpush1.xpose.msra.mxu0 0.0
    %1026 = vmatprep.subr.mxu0 0.0
    %1027 = vmatpush1.xpose.msra.mxu0 0.0
    %1028 = vmatprep.subr.mxu0 0.0
    %1029 = vmatpush1.xpose.msra.mxu0 0.0
    %1030 = vmatprep.subr.mxu0 0.0
    %1031 = vmatpush1.xpose.msra.mxu0 0.0
    %1032 = vmatprep.subr.mxu0 0.0
    %1033 = vmatpush1.xpose.msra.mxu0 0.0
    %1034 = vmatprep.subr.mxu0 0.0
    %1035 = vmatpush1.xpose.msra.mxu0 0.0
    %1036 = vmatprep.subr.mxu0 0.0
    %1037 = vmatpush1.xpose.msra.mxu0 0.0
    %1038 = vmatprep.subr.mxu0 0.0
    %1039 = vmatpush1.xpose.msra.mxu0 0.0
    %1040 = vmatprep.subr.mxu0 0.0
    %1041 = vmatpush1.xpose.msra.mxu0 0.0
    %1042 = vmatprep.subr.mxu0 0.0
    %1043 = vmatpush1.xpose.msra.mxu0 0.0
    %1044 = vmatprep.subr.mxu0 0.0
    %1045 = vmatpush1.xpose.msra.mxu0 0.0
    %1046 = vmatprep.subr.mxu0 0.0
    %1047 = vmatpush1.xpose.msra.mxu0 0.0
    %1048 = vmatprep.subr.mxu0 0.0
    %1049 = vmatpush1.xpose.msra.mxu0 0.0
    %1050 = vmatprep.subr.mxu0 0.0
    %1051 = vmatpush1.xpose.msra.mxu0 0.0
    %1052 = vmatprep.subr.mxu0 0.0
    %1053 = vmatpush1.xpose.msra.mxu0 0.0
    %1054 = vmatprep.subr.mxu0 0.0
    %1055 = vmatpush1.xpose.msra.mxu0 0.0
    %1056 = vmatprep.subr.mxu0 0.0
    %1057 = vmatpush1.xpose.msra.mxu0 0.0
    %1058 = vmatprep.subr.mxu0 0.0
    %1059 = vmatpush1.xpose.msra.mxu0 0.0
    %1060 = vmatprep.subr.mxu0 0.0
    %1061 = vmatpush1.xpose.msra.mxu0 0.0
    %1062 = vmatprep.subr.mxu0 0.0
    %1063 = vmatpush1.xpose.msra.mxu0 0.0
    %1064 = vmatprep.subr.mxu0 0.0
    %1065 = vmatpush1.xpose.msra.mxu0 0.0
    %1066 = vmatprep.subr.mxu0 0.0
    %1067 = vmatpush1.xpose.msra.mxu0 0.0
    %1068 = vmatprep.subr.mxu0 0.0
    %1069 = vmatpush1.xpose.msra.mxu0 0.0
    %1070 = vmatprep.mubr.f32.mxu0 0.0
    %1071 = vmatmul.mubr.f32.gmra.mrb[0].mxu0 %v447
    %v1072 = vpop.f32.mrb[0].mxu0
    %v1073 = vadd.f32 0.0, %v1072
    %v1074 = vpop.f32.mrb[0].mxu0
    %1075 = vmatprep.mubr.f32.mxu0 0.0
    %1076 = vmatmul.mubr.f32.gmra.mrb[0].mxu0 %v450
    %v1077 = vpop.f32.mrb[0].mxu0
    %v1078 = vadd.f32 0.0, %v1077
    %v1079 = vpop.f32.mrb[0].mxu0
    %1080 = vdwg.mxu0
    %v1081 = vld [vmem:[#allocation2] sm:$0xff]
    %v1082 = vld [vmem:[#allocation2 + $0x8] sm:$0xff]
    %vm1083 = vcmask 64512
    %v1085 = vsel %vm1083, %v433, 0
    %v1088 = vsel %vm1083, %v434, 0
    %v1091 = vsel %vm1083, %v522, 0
    %v1094 = vsel %vm1083, %v527, 0
    %1096 = vmatprep.subr.mxu0 0.0
    %1097 = vmatpush1.xpose.msra.mxu0 %v1091
    %1098 = vmatprep.subr.mxu0 0.0
    %1099 = vmatpush1.xpose.msra.mxu0 %v1094
    %1100 = vmatprep.subr.mxu0 0.0
    %1101 = vmatpush1.xpose.msra.mxu0 0.0
    %1102 = vmatprep.subr.mxu0 0.0
    %1103 = vmatpush1.xpose.msra.mxu0 0.0
    %1104 = vmatprep.subr.mxu0 0.0
    %1105 = vmatpush1.xpose.msra.mxu0 0.0
    %1106 = vmatprep.subr.mxu0 0.0
    %1107 = vmatpush1.xpose.msra.mxu0 0.0
    %1108 = vmatprep.subr.mxu0 0.0
    %1109 = vmatpush1.xpose.msra.mxu0 0.0
    %1110 = vmatprep.subr.mxu0 0.0
    %1111 = vmatpush1.xpose.msra.mxu0 0.0
    %1112 = vmatprep.subr.mxu0 0.0
    %1113 = vmatpush1.xpose.msra.mxu0 0.0
    %1114 = vmatprep.subr.mxu0 0.0
    %1115 = vmatpush1.xpose.msra.mxu0 0.0
    %1116 = vmatprep.subr.mxu0 0.0
    %1117 = vmatpush1.xpose.msra.mxu0 0.0
    %1118 = vmatprep.subr.mxu0 0.0
    %1119 = vmatpush1.xpose.msra.mxu0 0.0
    %1120 = vmatprep.subr.mxu0 0.0
    %1121 = vmatpush1.xpose.msra.mxu0 0.0
    %1122 = vmatprep.subr.mxu0 0.0
    %1123 = vmatpush1.xpose.msra.mxu0 0.0
    %1124 = vmatprep.subr.mxu0 0.0
    %1125 = vmatpush1.xpose.msra.mxu0 0.0
    %1126 = vmatprep.subr.mxu0 0.0
    %1127 = vmatpush1.xpose.msra.mxu0 0.0
    %1128 = vmatprep.subr.mxu0 0.0
    %1129 = vmatpush1.xpose.msra.mxu0 0.0
    %1130 = vmatprep.subr.mxu0 0.0
    %1131 = vmatpush1.xpose.msra.mxu0 0.0
    %1132 = vmatprep.subr.mxu0 0.0
    %1133 = vmatpush1.xpose.msra.mxu0 0.0
    %1134 = vmatprep.subr.mxu0 0.0
    %1135 = vmatpush1.xpose.msra.mxu0 0.0
    %1136 = vmatprep.subr.mxu0 0.0
    %1137 = vmatpush1.xpose.msra.mxu0 0.0
    %1138 = vmatprep.subr.mxu0 0.0
    %1139 = vmatpush1.xpose.msra.mxu0 0.0
    %1140 = vmatprep.subr.mxu0 0.0
    %1141 = vmatpush1.xpose.msra.mxu0 0.0
    %1142 = vmatprep.subr.mxu0 0.0
    %1143 = vmatpush1.xpose.msra.mxu0 0.0
    %1144 = vmatprep.subr.mxu0 0.0
    %1145 = vmatpush1.xpose.msra.mxu0 0.0
    %1146 = vmatprep.subr.mxu0 0.0
    %1147 = vmatpush1.xpose.msra.mxu0 0.0
    %1148 = vmatprep.subr.mxu0 0.0
    %1149 = vmatpush1.xpose.msra.mxu0 0.0
    %1150 = vmatprep.subr.mxu0 0.0
    %1151 = vmatpush1.xpose.msra.mxu0 0.0
    %1152 = vmatprep.subr.mxu0 0.0
    %1153 = vmatpush1.xpose.msra.mxu0 0.0
    %1154 = vmatprep.subr.mxu0 0.0
    %1155 = vmatpush1.xpose.msra.mxu0 0.0
    %1156 = vmatprep.subr.mxu0 0.0
    %1157 = vmatpush1.xpose.msra.mxu0 0.0
    %1158 = vmatprep.subr.mxu0 0.0
    %1159 = vmatpush1.xpose.msra.mxu0 0.0
    %1160 = vmatprep.mubr.f32.mxu0 0.0
    %1161 = vmatmul.mubr.f32.gmra.mrb[0].mxu0 %v1085
    %v1162 = vpop.f32.mrb[0].mxu0
    %v1163 = vadd.f32 %v1081, %v1162
    %v1164 = vpop.f32.mrb[0].mxu0
    %1165 = vmatprep.mubr.f32.mxu0 0.0
    %1166 = vmatmul.mubr.f32.gmra.mrb[0].mxu0 %v1088
    %v1167 = vpop.f32.mrb[0].mxu0
    %v1168 = vadd.f32 %v1082, %v1167
    %v1169 = vpop.f32.mrb[0].mxu0
    %1170 = vdwg.mxu0
    %v1172 = vsel %vm1083, %v435, 0
    %v1175 = vsel %vm1083, %v436, 0
    %v1178 = vsel %vm1083, %v600, 0
    %v1181 = vsel %vm1083, %v605, 0
    %1183 = vmatprep.subr.mxu0 0.0
    %1184 = vmatpush1.xpose.msra.mxu0 %v1178
    %1185 = vmatprep.subr.mxu0 0.0
    %1186 = vmatpush1.xpose.msra.mxu0 %v1181
    %1187 = vmatprep.subr.mxu0 0.0
    %1188 = vmatpush1.xpose.msra.mxu0 0.0
    %1189 = vmatprep.subr.mxu0 0.0
    %1190 = vmatpush1.xpose.msra.mxu0 0.0
    %1191 = vmatprep.subr.mxu0 0.0
    %1192 = vmatpush1.xpose.msra.mxu0 0.0
    %1193 = vmatprep.subr.mxu0 0.0
    %1194 = vmatpush1.xpose.msra.mxu0 0.0
    %1195 = vmatprep.subr.mxu0 0.0
    %1196 = vmatpush1.xpose.msra.mxu0 0.0
    %1197 = vmatprep.subr.mxu0 0.0
    %1198 = vmatpush1.xpose.msra.mxu0 0.0
    %1199 = vmatprep.subr.mxu0 0.0
    %1200 = vmatpush1.xpose.msra.mxu0 0.0
    %1201 = vmatprep.subr.mxu0 0.0
    %1202 = vmatpush1.xpose.msra.mxu0 0.0
    %1203 = vmatprep.subr.mxu0 0.0
    %1204 = vmatpush1.xpose.msra.mxu0 0.0
    %1205 = vmatprep.subr.mxu0 0.0
    %1206 = vmatpush1.xpose.msra.mxu0 0.0
    %1207 = vmatprep.subr.mxu0 0.0
    %1208 = vmatpush1.xpose.msra.mxu0 0.0
    %1209 = vmatprep.subr.mxu0 0.0
    %1210 = vmatpush1.xpose.msra.mxu0 0.0
    %1211 = vmatprep.subr.mxu0 0.0
    %1212 = vmatpush1.xpose.msra.mxu0 0.0
    %1213 = vmatprep.subr.mxu0 0.0
    %1214 = vmatpush1.xpose.msra.mxu0 0.0
    %1215 = vmatprep.subr.mxu0 0.0
    %1216 = vmatpush1.xpose.msra.mxu0 0.0
    %1217 = vmatprep.subr.mxu0 0.0
    %1218 = vmatpush1.xpose.msra.mxu0 0.0
    %1219 = vmatprep.subr.mxu0 0.0
    %1220 = vmatpush1.xpose.msra.mxu0 0.0
    %1221 = vmatprep.subr.mxu0 0.0
    %1222 = vmatpush1.xpose.msra.mxu0 0.0
    %1223 = vmatprep.subr.mxu0 0.0
    %1224 = vmatpush1.xpose.msra.mxu0 0.0
    %1225 = vmatprep.subr.mxu0 0.0
    %1226 = vmatpush1.xpose.msra.mxu0 0.0
    %1227 = vmatprep.subr.mxu0 0.0
    %1228 = vmatpush1.xpose.msra.mxu0 0.0
    %1229 = vmatprep.subr.mxu0 0.0
    %1230 = vmatpush1.xpose.msra.mxu0 0.0
    %1231 = vmatprep.subr.mxu0 0.0
    %1232 = vmatpush1.xpose.msra.mxu0 0.0
    %1233 = vmatprep.subr.mxu0 0.0
    %1234 = vmatpush1.xpose.msra.mxu0 0.0
    %1235 = vmatprep.subr.mxu0 0.0
    %1236 = vmatpush1.xpose.msra.mxu0 0.0
    %1237 = vmatprep.subr.mxu0 0.0
    %1238 = vmatpush1.xpose.msra.mxu0 0.0
    %1239 = vmatprep.subr.mxu0 0.0
    %1240 = vmatpush1.xpose.msra.mxu0 0.0
    %1241 = vmatprep.subr.mxu0 0.0
    %1242 = vmatpush1.xpose.msra.mxu0 0.0
    %1243 = vmatprep.subr.mxu0 0.0
    %1244 = vmatpush1.xpose.msra.mxu0 0.0
    %1245 = vmatprep.subr.mxu0 0.0
    %1246 = vmatpush1.xpose.msra.mxu0 0.0
    %1247 = vmatprep.mubr.f32.mxu0 0.0
    %1248 = vmatmul.mubr.f32.gmra.mrb[0].mxu0 %v1172
    %v1249 = vpop.f32.mrb[0].mxu0
    %v1250 = vadd.f32 %v1081, %v1249
    %v1251 = vpop.f32.mrb[0].mxu0
    %1252 = vmatprep.mubr.f32.mxu0 0.0
    %1253 = vmatmul.mubr.f32.gmra.mrb[0].mxu0 %v1175
    %v1254 = vpop.f32.mrb[0].mxu0
    %v1255 = vadd.f32 %v1082, %v1254
    %v1256 = vpop.f32.mrb[0].mxu0
    %1257 = vdwg.mxu0
    %v1259 = vsel %vm1083, %v437, 0
    %v1262 = vsel %vm1083, %v438, 0
    %v1265 = vsel %vm1083, %v678, 0
    %v1268 = vsel %vm1083, %v683, 0
    %1270 = vmatprep.subr.mxu0 0.0
    %1271 = vmatpush1.xpose.msra.mxu0 %v1265
    %1272 = vmatprep.subr.mxu0 0.0
    %1273 = vmatpush1.xpose.msra.mxu0 %v1268
    %1274 = vmatprep.subr.mxu0 0.0
    %1275 = vmatpush1.xpose.msra.mxu0 0.0
    %1276 = vmatprep.subr.mxu0 0.0
    %1277 = vmatpush1.xpose.msra.mxu0 0.0
    %1278 = vmatprep.subr.mxu0 0.0
    %1279 = vmatpush1.xpose.msra.mxu0 0.0
    %1280 = vmatprep.subr.mxu0 0.0
    %1281 = vmatpush1.xpose.msra.mxu0 0.0
    %1282 = vmatprep.subr.mxu0 0.0
    %1283 = vmatpush1.xpose.msra.mxu0 0.0
    %1284 = vmatprep.subr.mxu0 0.0
    %1285 = vmatpush1.xpose.msra.mxu0 0.0
    %1286 = vmatprep.subr.mxu0 0.0
    %1287 = vmatpush1.xpose.msra.mxu0 0.0
    %1288 = vmatprep.subr.mxu0 0.0
    %1289 = vmatpush1.xpose.msra.mxu0 0.0
    %1290 = vmatprep.subr.mxu0 0.0
    %1291 = vmatpush1.xpose.msra.mxu0 0.0
    %1292 = vmatprep.subr.mxu0 0.0
    %1293 = vmatpush1.xpose.msra.mxu0 0.0
    %1294 = vmatprep.subr.mxu0 0.0
    %1295 = vmatpush1.xpose.msra.mxu0 0.0
    %1296 = vmatprep.subr.mxu0 0.0
    %1297 = vmatpush1.xpose.msra.mxu0 0.0
    %1298 = vmatprep.subr.mxu0 0.0
    %1299 = vmatpush1.xpose.msra.mxu0 0.0
    %1300 = vmatprep.subr.mxu0 0.0
    %1301 = vmatpush1.xpose.msra.mxu0 0.0
    %1302 = vmatprep.subr.mxu0 0.0
    %1303 = vmatpush1.xpose.msra.mxu0 0.0
    %1304 = vmatprep.subr.mxu0 0.0
    %1305 = vmatpush1.xpose.msra.mxu0 0.0
    %1306 = vmatprep.subr.mxu0 0.0
    %1307 = vmatpush1.xpose.msra.mxu0 0.0
    %1308 = vmatprep.subr.mxu0 0.0
    %1309 = vmatpush1.xpose.msra.mxu0 0.0
    %1310 = vmatprep.subr.mxu0 0.0
    %1311 = vmatpush1.xpose.msra.mxu0 0.0
    %1312 = vmatprep.subr.mxu0 0.0
    %1313 = vmatpush1.xpose.msra.mxu0 0.0
    %1314 = vmatprep.subr.mxu0 0.0
    %1315 = vmatpush1.xpose.msra.mxu0 0.0
    %1316 = vmatprep.subr.mxu0 0.0
    %1317 = vmatpush1.xpose.msra.mxu0 0.0
    %1318 = vmatprep.subr.mxu0 0.0
    %1319 = vmatpush1.xpose.msra.mxu0 0.0
    %1320 = vmatprep.subr.mxu0 0.0
    %1321 = vmatpush1.xpose.msra.mxu0 0.0
    %1322 = vmatprep.subr.mxu0 0.0
    %1323 = vmatpush1.xpose.msra.mxu0 0.0
    %1324 = vmatprep.subr.mxu0 0.0
    %1325 = vmatpush1.xpose.msra.mxu0 0.0
    %1326 = vmatprep.subr.mxu0 0.0
    %1327 = vmatpush1.xpose.msra.mxu0 0.0
    %1328 = vmatprep.subr.mxu0 0.0
    %1329 = vmatpush1.xpose.msra.mxu0 0.0
    %1330 = vmatprep.subr.mxu0 0.0
    %1331 = vmatpush1.xpose.msra.mxu0 0.0
    %1332 = vmatprep.subr.mxu0 0.0
    %1333 = vmatpush1.xpose.msra.mxu0 0.0
    %1334 = vmatprep.mubr.f32.mxu0 0.0
    %1335 = vmatmul.mubr.f32.gmra.mrb[0].mxu0 %v1259
    %v1336 = vpop.f32.mrb[0].mxu0
    %v1337 = vadd.f32 %v1081, %v1336
    %v1338 = vpop.f32.mrb[0].mxu0
    %1339 = vmatprep.mubr.f32.mxu0 0.0
    %1340 = vmatmul.mubr.f32.gmra.mrb[0].mxu0 %v1262
    %v1341 = vpop.f32.mrb[0].mxu0
    %v1342 = vadd.f32 %v1082, %v1341
    %v1343 = vpop.f32.mrb[0].mxu0
    %1344 = vdwg.mxu0
    %v1346 = vsel %vm1083, %v439, 0
    %v1349 = vsel %vm1083, %v440, 0
    %v1352 = vsel %vm1083, %v756, 0
    %v1355 = vsel %vm1083, %v761, 0
    %1357 = vmatprep.subr.mxu0 0.0
    %1358 = vmatpush1.xpose.msra.mxu0 %v1352
    %1359 = vmatprep.subr.mxu0 0.0
    %1360 = vmatpush1.xpose.msra.mxu0 %v1355
    %1361 = vmatprep.subr.mxu0 0.0
    %1362 = vmatpush1.xpose.msra.mxu0 0.0
    %1363 = vmatprep.subr.mxu0 0.0
    %1364 = vmatpush1.xpose.msra.mxu0 0.0
    %1365 = vmatprep.subr.mxu0 0.0
    %1366 = vmatpush1.xpose.msra.mxu0 0.0
    %1367 = vmatprep.subr.mxu0 0.0
    %1368 = vmatpush1.xpose.msra.mxu0 0.0
    %1369 = vmatprep.subr.mxu0 0.0
    %1370 = vmatpush1.xpose.msra.mxu0 0.0
    %1371 = vmatprep.subr.mxu0 0.0
    %1372 = vmatpush1.xpose.msra.mxu0 0.0
    %1373 = vmatprep.subr.mxu0 0.0
    %1374 = vmatpush1.xpose.msra.mxu0 0.0
    %1375 = vmatprep.subr.mxu0 0.0
    %1376 = vmatpush1.xpose.msra.mxu0 0.0
    %1377 = vmatprep.subr.mxu0 0.0
    %1378 = vmatpush1.xpose.msra.mxu0 0.0
    %1379 = vmatprep.subr.mxu0 0.0
    %1380 = vmatpush1.xpose.msra.mxu0 0.0
    %1381 = vmatprep.subr.mxu0 0.0
    %1382 = vmatpush1.xpose.msra.mxu0 0.0
    %1383 = vmatprep.subr.mxu0 0.0
    %1384 = vmatpush1.xpose.msra.mxu0 0.0
    %1385 = vmatprep.subr.mxu0 0.0
    %1386 = vmatpush1.xpose.msra.mxu0 0.0
    %1387 = vmatprep.subr.mxu0 0.0
    %1388 = vmatpush1.xpose.msra.mxu0 0.0
    %1389 = vmatprep.subr.mxu0 0.0
    %1390 = vmatpush1.xpose.msra.mxu0 0.0
    %1391 = vmatprep.subr.mxu0 0.0
    %1392 = vmatpush1.xpose.msra.mxu0 0.0
    %1393 = vmatprep.subr.mxu0 0.0
    %1394 = vmatpush1.xpose.msra.mxu0 0.0
    %1395 = vmatprep.subr.mxu0 0.0
    %1396 = vmatpush1.xpose.msra.mxu0 0.0
    %1397 = vmatprep.subr.mxu0 0.0
    %1398 = vmatpush1.xpose.msra.mxu0 0.0
    %1399 = vmatprep.subr.mxu0 0.0
    %1400 = vmatpush1.xpose.msra.mxu0 0.0
    %1401 = vmatprep.subr.mxu0 0.0
    %1402 = vmatpush1.xpose.msra.mxu0 0.0
    %1403 = vmatprep.subr.mxu0 0.0
    %1404 = vmatpush1.xpose.msra.mxu0 0.0
    %1405 = vmatprep.subr.mxu0 0.0
    %1406 = vmatpush1.xpose.msra.mxu0 0.0
    %1407 = vmatprep.subr.mxu0 0.0
    %1408 = vmatpush1.xpose.msra.mxu0 0.0
    %1409 = vmatprep.subr.mxu0 0.0
    %1410 = vmatpush1.xpose.msra.mxu0 0.0
    %1411 = vmatprep.subr.mxu0 0.0
    %1412 = vmatpush1.xpose.msra.mxu0 0.0
    %1413 = vmatprep.subr.mxu0 0.0
    %1414 = vmatpush1.xpose.msra.mxu0 0.0
    %1415 = vmatprep.subr.mxu0 0.0
    %1416 = vmatpush1.xpose.msra.mxu0 0.0
    %1417 = vmatprep.subr.mxu0 0.0
    %1418 = vmatpush1.xpose.msra.mxu0 0.0
    %1419 = vmatprep.subr.mxu0 0.0
    %1420 = vmatpush1.xpose.msra.mxu0 0.0
    %1421 = vmatprep.mubr.f32.mxu0 0.0
    %1422 = vmatmul.mubr.f32.gmra.mrb[0].mxu0 %v1346
    %v1423 = vpop.f32.mrb[0].mxu0
    %v1424 = vadd.f32 %v1081, %v1423
    %v1425 = vpop.f32.mrb[0].mxu0
    %1426 = vmatprep.mubr.f32.mxu0 0.0
    %1427 = vmatmul.mubr.f32.gmra.mrb[0].mxu0 %v1349
    %v1428 = vpop.f32.mrb[0].mxu0
    %v1429 = vadd.f32 %v1082, %v1428
    %v1430 = vpop.f32.mrb[0].mxu0
    %1431 = vdwg.mxu0
    %vm1432 = vcmask 130048
    %v1433 = vsel %vm1432, %v1163, -inf
    %1434 = vmax.xlane.f32.xlu0 %v1433
    %v1435 = vpop.xlane.xlu0 %1434
    %v1436 = vsel %vm1432, %v1168, -inf
    %1437 = vmax.xlane.f32.xlu0 %v1436
    %v1438 = vpop.xlane.xlu0 %1437
    %v1439 = vsel %vm1432, %v1250, -inf
    %1440 = vmax.xlane.f32.xlu0 %v1439
    %v1441 = vpop.xlane.xlu0 %1440
    %v1442 = vsel %vm1432, %v1255, -inf
    %1443 = vmax.xlane.f32.xlu0 %v1442
    %v1444 = vpop.xlane.xlu0 %1443
    %v1445 = vsel %vm1432, %v1337, -inf
    %1446 = vmax.xlane.f32.xlu0 %v1445
    %v1447 = vpop.xlane.xlu0 %1446
    %v1448 = vsel %vm1432, %v1342, -inf
    %1449 = vmax.xlane.f32.xlu0 %v1448
    %v1450 = vpop.xlane.xlu0 %1449
    %v1451 = vsel %vm1432, %v1424, -inf
    %1452 = vmax.xlane.f32.xlu0 %v1451
    %v1453 = vpop.xlane.xlu0 %1452
    %v1454 = vsel %vm1432, %v1429, -inf
    %1455 = vmax.xlane.f32.xlu0 %v1454
    %v1456 = vpop.xlane.xlu0 %1455
    %v1457 = vsub.f32 %v1163, %v1435
    %v1458 = vsub.f32 %v1168, %v1438
    %v1459 = vsub.f32 %v1250, %v1441
    %v1460 = vsub.f32 %v1255, %v1444
    %v1461 = vsub.f32 %v1337, %v1447
    %v1462 = vsub.f32 %v1342, %v1450
    %v1463 = vsub.f32 %v1424, %v1453
    %v1464 = vsub.f32 %v1429, %v1456
    %v1465 = vmul.f32 %v1457, 1.442695
    %v1466 = vpow.pop %v1465
    %v1467 = vmul.f32 %v1458, 1.442695
    %v1468 = vpow.pop %v1467
    %v1469 = vmul.f32 %v1459, 1.442695
    %v1470 = vpow.pop %v1469
    %v1471 = vmul.f32 %v1460, 1.442695
    %v1472 = vpow.pop %v1471
    %v1473 = vmul.f32 %v1461, 1.442695
    %v1474 = vpow.pop %v1473
    %v1475 = vmul.f32 %v1462, 1.442695
    %v1476 = vpow.pop %v1475
    %v1477 = vmul.f32 %v1463, 1.442695
    %v1478 = vpow.pop %v1477
    %v1479 = vmul.f32 %v1464, 1.442695
    %v1480 = vpow.pop %v1479
    %v1481 = vsel %vm1432, %v1466, 0.0
    %1482 = vadd.xlane.f32.xlu0 %v1481
    %v1483 = vpop.xlane.xlu0 %1482
    %v1484 = vsel %vm1432, %v1468, 0.0
    %1485 = vadd.xlane.f32.xlu0 %v1484
    %v1486 = vpop.xlane.xlu0 %1485
    %v1487 = vsel %vm1432, %v1470, 0.0
    %1488 = vadd.xlane.f32.xlu0 %v1487
    %v1489 = vpop.xlane.xlu0 %1488
    %v1490 = vsel %vm1432, %v1472, 0.0
    %1491 = vadd.xlane.f32.xlu0 %v1490
    %v1492 = vpop.xlane.xlu0 %1491
    %v1493 = vsel %vm1432, %v1474, 0.0
    %1494 = vadd.xlane.f32.xlu0 %v1493
    %v1495 = vpop.xlane.xlu0 %1494
    %v1496 = vsel %vm1432, %v1476, 0.0
    %1497 = vadd.xlane.f32.xlu0 %v1496
    %v1498 = vpop.xlane.xlu0 %1497
    %v1499 = vsel %vm1432, %v1478, 0.0
    %1500 = vadd.xlane.f32.xlu0 %v1499
    %v1501 = vpop.xlane.xlu0 %1500
    %v1502 = vsel %vm1432, %v1480, 0.0
    %1503 = vadd.xlane.f32.xlu0 %v1502
    %v1504 = vpop.xlane.xlu0 %1503
    %v1505 = vrcp.pop %v1483
    %v1506 = vrcp.pop %v1486
    %v1507 = vrcp.pop %v1489
    %v1508 = vrcp.pop %v1492
    %v1509 = vrcp.pop %v1495
    %v1510 = vrcp.pop %v1498
    %v1511 = vrcp.pop %v1501
    %v1512 = vrcp.pop %v1504
    %v1513 = vmul.f32 %v1466, %v1505
    %v1514 = vmul.f32 %v1468, %v1506
    %v1515 = vmul.f32 %v1470, %v1507
    %v1516 = vmul.f32 %v1472, %v1508
    %v1517 = vmul.f32 %v1474, %v1509
    %v1518 = vmul.f32 %v1476, %v1510
    %v1519 = vmul.f32 %v1478, %v1511
    %v1520 = vmul.f32 %v1480, %v1512
    %vm1521 = vcmp.gt.f32.partialorder %v1081, -5000.0
    %vm1522 = vcmp.gt.f32.partialorder %v1082, -5000.0
    %v1523 = vsel %vm1521, 1, 0
    %v1524 = vsel %vm1522, 1, 0
    %v1525 = vcvt.s32.f32 %v1523
    %v1526 = vcvt.s32.f32 %v1524
    %v1527 = vmul.f32 %v1513, %v1525
    %v1528 = vmul.f32 %v1514, %v1526
    %v1529 = vmul.f32 %v1515, %v1525
    %v1530 = vmul.f32 %v1516, %v1526
    %v1531 = vmul.f32 %v1517, %v1525
    %v1532 = vmul.f32 %v1518, %v1526
    %v1533 = vmul.f32 %v1519, %v1525
    %v1534 = vmul.f32 %v1520, %v1526
    %v1536 = vsel %vm1432, %v1527, 0
    %v1539 = vsel %vm1432, %v1528, 0
    %1541 = vmatprep.subr.mxu0 0.0
    %1542 = vmatpush1.msra.mxu0 %v839
    %1543 = vmatprep.subr.mxu0 0.0
    %1544 = vmatpush1.msra.mxu0 %v844
    %1545 = vmatprep.subr.mxu0 0.0
    %1546 = vmatpush1.msra.mxu0 0.0
    %1547 = vmatprep.subr.mxu0 0.0
    %1548 = vmatpush1.msra.mxu0 0.0
    %1549 = vmatprep.subr.mxu0 0.0
    %1550 = vmatpush1.msra.mxu0 0.0
    %1551 = vmatprep.subr.mxu0 0.0
    %1552 = vmatpush1.msra.mxu0 0.0
    %1553 = vmatprep.subr.mxu0 0.0
    %1554 = vmatpush1.msra.mxu0 0.0
    %1555 = vmatprep.subr.mxu0 0.0
    %1556 = vmatpush1.msra.mxu0 0.0
    %1557 = vmatprep.subr.mxu0 0.0
    %1558 = vmatpush1.msra.mxu0 0.0
    %1559 = vmatprep.subr.mxu0 0.0
    %1560 = vmatpush1.msra.mxu0 0.0
    %1561 = vmatprep.subr.mxu0 0.0
    %1562 = vmatpush1.msra.mxu0 0.0
    %1563 = vmatprep.subr.mxu0 0.0
    %1564 = vmatpush1.msra.mxu0 0.0
    %1565 = vmatprep.subr.mxu0 0.0
    %1566 = vmatpush1.msra.mxu0 0.0
    %1567 = vmatprep.subr.mxu0 0.0
    %1568 = vmatpush1.msra.mxu0 0.0
    %1569 = vmatprep.subr.mxu0 0.0
    %1570 = vmatpush1.msra.mxu0 0.0
    %1571 = vmatprep.subr.mxu0 0.0
    %1572 = vmatpush1.msra.mxu0 0.0
    %1573 = vmatprep.subr.mxu0 0.0
    %1574 = vmatpush1.msra.mxu0 0.0
    %1575 = vmatprep.subr.mxu0 0.0
    %1576 = vmatpush1.msra.mxu0 0.0
    %1577 = vmatprep.subr.mxu0 0.0
    %1578 = vmatpush1.msra.mxu0 0.0
    %1579 = vmatprep.subr.mxu0 0.0
    %1580 = vmatpush1.msra.mxu0 0.0
    %1581 = vmatprep.subr.mxu0 0.0
    %1582 = vmatpush1.msra.mxu0 0.0
    %1583 = vmatprep.subr.mxu0 0.0
    %1584 = vmatpush1.msra.mxu0 0.0
    %1585 = vmatprep.subr.mxu0 0.0
    %1586 = vmatpush1.msra.mxu0 0.0
    %1587 = vmatprep.subr.mxu0 0.0
    %1588 = vmatpush1.msra.mxu0 0.0
    %1589 = vmatprep.subr.mxu0 0.0
    %1590 = vmatpush1.msra.mxu0 0.0
    %1591 = vmatprep.subr.mxu0 0.0
    %1592 = vmatpush1.msra.mxu0 0.0
    %1593 = vmatprep.subr.mxu0 0.0
    %1594 = vmatpush1.msra.mxu0 0.0
    %1595 = vmatprep.subr.mxu0 0.0
    %1596 = vmatpush1.msra.mxu0 0.0
    %1597 = vmatprep.subr.mxu0 0.0
    %1598 = vmatpush1.msra.mxu0 0.0
    %1599 = vmatprep.subr.mxu0 0.0
    %1600 = vmatpush1.msra.mxu0 0.0
    %1601 = vmatprep.subr.mxu0 0.0
    %1602 = vmatpush1.msra.mxu0 0.0
    %1603 = vmatprep.subr.mxu0 0.0
    %1604 = vmatpush1.msra.mxu0 0.0
    %1605 = vmatprep.mubr.f32.mxu0 0.0
    %1606 = vmatmul.mubr.f32.gmra.mrb[0].mxu0 %v1536
    %v1607 = vpop.f32.mrb[0].mxu0
    %v1608 = vadd.f32 0.0, %v1607
    %v1609 = vpop.f32.mrb[0].mxu0
    %1610 = vmatprep.mubr.f32.mxu0 0.0
    %1611 = vmatmul.mubr.f32.gmra.mrb[0].mxu0 %v1539
    %v1612 = vpop.f32.mrb[0].mxu0
    %v1613 = vadd.f32 0.0, %v1612
    %v1614 = vpop.f32.mrb[0].mxu0
    %1615 = vdwg.mxu0
    %v1617 = vsel %vm1432, %v1529, 0
    %v1620 = vsel %vm1432, %v1530, 0
    %1622 = vmatprep.subr.mxu0 0.0
    %1623 = vmatpush1.msra.mxu0 %v917
    %1624 = vmatprep.subr.mxu0 0.0
    %1625 = vmatpush1.msra.mxu0 %v922
    %1626 = vmatprep.subr.mxu0 0.0
    %1627 = vmatpush1.msra.mxu0 0.0
    %1628 = vmatprep.subr.mxu0 0.0
    %1629 = vmatpush1.msra.mxu0 0.0
    %1630 = vmatprep.subr.mxu0 0.0
    %1631 = vmatpush1.msra.mxu0 0.0
    %1632 = vmatprep.subr.mxu0 0.0
    %1633 = vmatpush1.msra.mxu0 0.0
    %1634 = vmatprep.subr.mxu0 0.0
    %1635 = vmatpush1.msra.mxu0 0.0
    %1636 = vmatprep.subr.mxu0 0.0
    %1637 = vmatpush1.msra.mxu0 0.0
    %1638 = vmatprep.subr.mxu0 0.0
    %1639 = vmatpush1.msra.mxu0 0.0
    %1640 = vmatprep.subr.mxu0 0.0
    %1641 = vmatpush1.msra.mxu0 0.0
    %1642 = vmatprep.subr.mxu0 0.0
    %1643 = vmatpush1.msra.mxu0 0.0
    %1644 = vmatprep.subr.mxu0 0.0
    %1645 = vmatpush1.msra.mxu0 0.0
    %1646 = vmatprep.subr.mxu0 0.0
    %1647 = vmatpush1.msra.mxu0 0.0
    %1648 = vmatprep.subr.mxu0 0.0
    %1649 = vmatpush1.msra.mxu0 0.0
    %1650 = vmatprep.subr.mxu0 0.0
    %1651 = vmatpush1.msra.mxu0 0.0
    %1652 = vmatprep.subr.mxu0 0.0
    %1653 = vmatpush1.msra.mxu0 0.0
    %1654 = vmatprep.subr.mxu0 0.0
    %1655 = vmatpush1.msra.mxu0 0.0
    %1656 = vmatprep.subr.mxu0 0.0
    %1657 = vmatpush1.msra.mxu0 0.0
    %1658 = vmatprep.subr.mxu0 0.0
    %1659 = vmatpush1.msra.mxu0 0.0
    %1660 = vmatprep.subr.mxu0 0.0
    %1661 = vmatpush1.msra.mxu0 0.0
    %1662 = vmatprep.subr.mxu0 0.0
    %1663 = vmatpush1.msra.mxu0 0.0
    %1664 = vmatprep.subr.mxu0 0.0
    %1665 = vmatpush1.msra.mxu0 0.0
    %1666 = vmatprep.subr.mxu0 0.0
    %1667 = vmatpush1.msra.mxu0 0.0
    %1668 = vmatprep.subr.mxu0 0.0
    %1669 = vmatpush1.msra.mxu0 0.0
    %1670 = vmatprep.subr.mxu0 0.0
    %1671 = vmatpush1.msra.mxu0 0.0
    %1672 = vmatprep.subr.mxu0 0.0
    %1673 = vmatpush1.msra.mxu0 0.0
    %1674 = vmatprep.subr.mxu0 0.0
    %1675 = vmatpush1.msra.mxu0 0.0
    %1676 = vmatprep.subr.mxu0 0.0
    %1677 = vmatpush1.msra.mxu0 0.0
    %1678 = vmatprep.subr.mxu0 0.0
    %1679 = vmatpush1.msra.mxu0 0.0
    %1680 = vmatprep.subr.mxu0 0.0
    %1681 = vmatpush1.msra.mxu0 0.0
    %1682 = vmatprep.subr.mxu0 0.0
    %1683 = vmatpush1.msra.mxu0 0.0
    %1684 = vmatprep.subr.mxu0 0.0
    %1685 = vmatpush1.msra.mxu0 0.0
    %1686 = vmatprep.mubr.f32.mxu0 0.0
    %1687 = vmatmul.mubr.f32.gmra.mrb[0].mxu0 %v1617
    %v1688 = vpop.f32.mrb[0].mxu0
    %v1689 = vadd.f32 0.0, %v1688
    %v1690 = vpop.f32.mrb[0].mxu0
    %1691 = vmatprep.mubr.f32.mxu0 0.0
    %1692 = vmatmul.mubr.f32.gmra.mrb[0].mxu0 %v1620
    %v1693 = vpop.f32.mrb[0].mxu0
    %v1694 = vadd.f32 0.0, %v1693
    %v1695 = vpop.f32.mrb[0].mxu0
    %1696 = vdwg.mxu0
    %v1698 = vsel %vm1432, %v1531, 0
    %v1701 = vsel %vm1432, %v1532, 0
    %1703 = vmatprep.subr.mxu0 0.0
    %1704 = vmatpush1.msra.mxu0 %v995
    %1705 = vmatprep.subr.mxu0 0.0
    %1706 = vmatpush1.msra.mxu0 %v1000
    %1707 = vmatprep.subr.mxu0 0.0
    %1708 = vmatpush1.msra.mxu0 0.0
    %1709 = vmatprep.subr.mxu0 0.0
    %1710 = vmatpush1.msra.mxu0 0.0
    %1711 = vmatprep.subr.mxu0 0.0
    %1712 = vmatpush1.msra.mxu0 0.0
    %1713 = vmatprep.subr.mxu0 0.0
    %1714 = vmatpush1.msra.mxu0 0.0
    %1715 = vmatprep.subr.mxu0 0.0
    %1716 = vmatpush1.msra.mxu0 0.0
    %1717 = vmatprep.subr.mxu0 0.0
    %1718 = vmatpush1.msra.mxu0 0.0
    %1719 = vmatprep.subr.mxu0 0.0
    %1720 = vmatpush1.msra.mxu0 0.0
    %1721 = vmatprep.subr.mxu0 0.0
    %1722 = vmatpush1.msra.mxu0 0.0
    %1723 = vmatprep.subr.mxu0 0.0
    %1724 = vmatpush1.msra.mxu0 0.0
    %1725 = vmatprep.subr.mxu0 0.0
    %1726 = vmatpush1.msra.mxu0 0.0
    %1727 = vmatprep.subr.mxu0 0.0
    %1728 = vmatpush1.msra.mxu0 0.0
    %1729 = vmatprep.subr.mxu0 0.0
    %1730 = vmatpush1.msra.mxu0 0.0
    %1731 = vmatprep.subr.mxu0 0.0
    %1732 = vmatpush1.msra.mxu0 0.0
    %1733 = vmatprep.subr.mxu0 0.0
    %1734 = vmatpush1.msra.mxu0 0.0
    %1735 = vmatprep.subr.mxu0 0.0
    %1736 = vmatpush1.msra.mxu0 0.0
    %1737 = vmatprep.subr.mxu0 0.0
    %1738 = vmatpush1.msra.mxu0 0.0
    %1739 = vmatprep.subr.mxu0 0.0
    %1740 = vmatpush1.msra.mxu0 0.0
    %1741 = vmatprep.subr.mxu0 0.0
    %1742 = vmatpush1.msra.mxu0 0.0
    %1743 = vmatprep.subr.mxu0 0.0
    %1744 = vmatpush1.msra.mxu0 0.0
    %1745 = vmatprep.subr.mxu0 0.0
    %1746 = vmatpush1.msra.mxu0 0.0
    %1747 = vmatprep.subr.mxu0 0.0
    %1748 = vmatpush1.msra.mxu0 0.0
    %1749 = vmatprep.subr.mxu0 0.0
    %1750 = vmatpush1.msra.mxu0 0.0
    %1751 = vmatprep.subr.mxu0 0.0
    %1752 = vmatpush1.msra.mxu0 0.0
    %1753 = vmatprep.subr.mxu0 0.0
    %1754 = vmatpush1.msra.mxu0 0.0
    %1755 = vmatprep.subr.mxu0 0.0
    %1756 = vmatpush1.msra.mxu0 0.0
    %1757 = vmatprep.subr.mxu0 0.0
    %1758 = vmatpush1.msra.mxu0 0.0
    %1759 = vmatprep.subr.mxu0 0.0
    %1760 = vmatpush1.msra.mxu0 0.0
    %1761 = vmatprep.subr.mxu0 0.0
    %1762 = vmatpush1.msra.mxu0 0.0
    %1763 = vmatprep.subr.mxu0 0.0
    %1764 = vmatpush1.msra.mxu0 0.0
    %1765 = vmatprep.subr.mxu0 0.0
    %1766 = vmatpush1.msra.mxu0 0.0
    %1767 = vmatprep.mubr.f32.mxu0 0.0
    %1768 = vmatmul.mubr.f32.gmra.mrb[0].mxu0 %v1698
    %v1769 = vpop.f32.mrb[0].mxu0
    %v1770 = vadd.f32 0.0, %v1769
    %v1771 = vpop.f32.mrb[0].mxu0
    %1772 = vmatprep.mubr.f32.mxu0 0.0
    %1773 = vmatmul.mubr.f32.gmra.mrb[0].mxu0 %v1701
    %v1774 = vpop.f32.mrb[0].mxu0
    %v1775 = vadd.f32 0.0, %v1774
    %v1776 = vpop.f32.mrb[0].mxu0
    %1777 = vdwg.mxu0
    %v1779 = vsel %vm1432, %v1533, 0
    %v1782 = vsel %vm1432, %v1534, 0
    %1784 = vmatprep.subr.mxu0 0.0
    %1785 = vmatpush1.msra.mxu0 %v1073
    %1786 = vmatprep.subr.mxu0 0.0
    %1787 = vmatpush1.msra.mxu0 %v1078
    %1788 = vmatprep.subr.mxu0 0.0
    %1789 = vmatpush1.msra.mxu0 0.0
    %1790 = vmatprep.subr.mxu0 0.0
    %1791 = vmatpush1.msra.mxu0 0.0
    %1792 = vmatprep.subr.mxu0 0.0
    %1793 = vmatpush1.msra.mxu0 0.0
    %1794 = vmatprep.subr.mxu0 0.0
    %1795 = vmatpush1.msra.mxu0 0.0
    %1796 = vmatprep.subr.mxu0 0.0
    %1797 = vmatpush1.msra.mxu0 0.0
    %1798 = vmatprep.subr.mxu0 0.0
    %1799 = vmatpush1.msra.mxu0 0.0
    %1800 = vmatprep.subr.mxu0 0.0
    %1801 = vmatpush1.msra.mxu0 0.0
    %1802 = vmatprep.subr.mxu0 0.0
    %1803 = vmatpush1.msra.mxu0 0.0
    %1804 = vmatprep.subr.mxu0 0.0
    %1805 = vmatpush1.msra.mxu0 0.0
    %1806 = vmatprep.subr.mxu0 0.0
    %1807 = vmatpush1.msra.mxu0 0.0
    %1808 = vmatprep.subr.mxu0 0.0
    %1809 = vmatpush1.msra.mxu0 0.0
    %1810 = vmatprep.subr.mxu0 0.0
    %1811 = vmatpush1.msra.mxu0 0.0
    %1812 = vmatprep.subr.mxu0 0.0
    %1813 = vmatpush1.msra.mxu0 0.0
    %1814 = vmatprep.subr.mxu0 0.0
    %1815 = vmatpush1.msra.mxu0 0.0
    %1816 = vmatprep.subr.mxu0 0.0
    %1817 = vmatpush1.msra.mxu0 0.0
    %1818 = vmatprep.subr.mxu0 0.0
    %1819 = vmatpush1.msra.mxu0 0.0
    %1820 = vmatprep.subr.mxu0 0.0
    %1821 = vmatpush1.msra.mxu0 0.0
    %1822 = vmatprep.subr.mxu0 0.0
    %1823 = vmatpush1.msra.mxu0 0.0
    %1824 = vmatprep.subr.mxu0 0.0
    %1825 = vmatpush1.msra.mxu0 0.0
    %1826 = vmatprep.subr.mxu0 0.0
    %1827 = vmatpush1.msra.mxu0 0.0
    %1828 = vmatprep.subr.mxu0 0.0
    %1829 = vmatpush1.msra.mxu0 0.0
    %1830 = vmatprep.subr.mxu0 0.0
    %1831 = vmatpush1.msra.mxu0 0.0
    %1832 = vmatprep.subr.mxu0 0.0
    %1833 = vmatpush1.msra.mxu0 0.0
    %1834 = vmatprep.subr.mxu0 0.0
    %1835 = vmatpush1.msra.mxu0 0.0
    %1836 = vmatprep.subr.mxu0 0.0
    %1837 = vmatpush1.msra.mxu0 0.0
    %1838 = vmatprep.subr.mxu0 0.0
    %1839 = vmatpush1.msra.mxu0 0.0
    %1840 = vmatprep.subr.mxu0 0.0
    %1841 = vmatpush1.msra.mxu0 0.0
    %1842 = vmatprep.subr.mxu0 0.0
    %1843 = vmatpush1.msra.mxu0 0.0
    %1844 = vmatprep.subr.mxu0 0.0
    %1845 = vmatpush1.msra.mxu0 0.0
    %1846 = vmatprep.subr.mxu0 0.0
    %1847 = vmatpush1.msra.mxu0 0.0
    %1848 = vmatprep.mubr.f32.mxu0 0.0
    %1849 = vmatmul.mubr.f32.gmra.mrb[0].mxu0 %v1779
    %v1850 = vpop.f32.mrb[0].mxu0
    %v1851 = vadd.f32 0.0, %v1850
    %v1852 = vpop.f32.mrb[0].mxu0
    %1853 = vmatprep.mubr.f32.mxu0 0.0
    %1854 = vmatmul.mubr.f32.gmra.mrb[0].mxu0 %v1782
    %v1855 = vpop.f32.mrb[0].mxu0
    %v1856 = vadd.f32 0.0, %v1855
    %v1857 = vpop.f32.mrb[0].mxu0
    %1858 = vdwg.mxu0
    %s1859 = scalar_lea.vmem %s2, 96
    %v1860 = vld [vmem:[%s1859] sm:$0xff]
    %v1861 = vld [vmem:[%s1859 + $0x8] sm:$0xff]
    %v1862 = vld [vmem:[%s1859 + $0x10] sm:$0xff]
    %v1863 = vld [vmem:[%s1859 + $0x18] sm:$0xff]
    %v1865 = vsel %vm1083, %v1608, 0
    %v1868 = vsel %vm1083, %v1613, 0
    %1870 = vmatprep.subr.mxu0 0.0
    %1871 = vmatpush1.msra.mxu0 %v1860
    %1872 = vmatprep.subr.mxu0 0.0
    %1873 = vmatpush1.msra.mxu0 0.0
    %1874 = vmatprep.subr.mxu0 0.0
    %1875 = vmatpush1.msra.mxu0 0.0
    %1876 = vmatprep.subr.mxu0 0.0
    %1877 = vmatpush1.msra.mxu0 0.0
    %1878 = vmatprep.subr.mxu0 0.0
    %1879 = vmatpush1.msra.mxu0 0.0
    %1880 = vmatprep.subr.mxu0 0.0
    %1881 = vmatpush1.msra.mxu0 0.0
    %1882 = vmatprep.subr.mxu0 0.0
    %1883 = vmatpush1.msra.mxu0 0.0
    %1884 = vmatprep.subr.mxu0 0.0
    %1885 = vmatpush1.msra.mxu0 0.0
    %1886 = vmatprep.subr.mxu0 0.0
    %1887 = vmatpush1.msra.mxu0 0.0
    %1888 = vmatprep.subr.mxu0 0.0
    %1889 = vmatpush1.msra.mxu0 0.0
    %1890 = vmatprep.subr.mxu0 0.0
    %1891 = vmatpush1.msra.mxu0 0.0
    %1892 = vmatprep.subr.mxu0 0.0
    %1893 = vmatpush1.msra.mxu0 0.0
    %1894 = vmatprep.subr.mxu0 0.0
    %1895 = vmatpush1.msra.mxu0 0.0
    %1896 = vmatprep.subr.mxu0 0.0
    %1897 = vmatpush1.msra.mxu0 0.0
    %1898 = vmatprep.subr.mxu0 0.0
    %1899 = vmatpush1.msra.mxu0 0.0
    %1900 = vmatprep.subr.mxu0 0.0
    %1901 = vmatpush1.msra.mxu0 0.0
    %1902 = vmatprep.subr.mxu0 0.0
    %1903 = vmatpush1.msra.mxu0 0.0
    %1904 = vmatprep.subr.mxu0 0.0
    %1905 = vmatpush1.msra.mxu0 0.0
    %1906 = vmatprep.subr.mxu0 0.0
    %1907 = vmatpush1.msra.mxu0 0.0
    %1908 = vmatprep.subr.mxu0 0.0
    %1909 = vmatpush1.msra.mxu0 0.0
    %1910 = vmatprep.subr.mxu0 0.0
    %1911 = vmatpush1.msra.mxu0 0.0
    %1912 = vmatprep.subr.mxu0 0.0
    %1913 = vmatpush1.msra.mxu0 0.0
    %1914 = vmatprep.subr.mxu0 0.0
    %1915 = vmatpush1.msra.mxu0 0.0
    %1916 = vmatprep.subr.mxu0 0.0
    %1917 = vmatpush1.msra.mxu0 0.0
    %1918 = vmatprep.subr.mxu0 0.0
    %1919 = vmatpush1.msra.mxu0 0.0
    %1920 = vmatprep.subr.mxu0 0.0
    %1921 = vmatpush1.msra.mxu0 0.0
    %1922 = vmatprep.subr.mxu0 0.0
    %1923 = vmatpush1.msra.mxu0 0.0
    %1924 = vmatprep.subr.mxu0 0.0
    %1925 = vmatpush1.msra.mxu0 0.0
    %1926 = vmatprep.subr.mxu0 0.0
    %1927 = vmatpush1.msra.mxu0 0.0
    %1928 = vmatprep.subr.mxu0 0.0
    %1929 = vmatpush1.msra.mxu0 0.0
    %1930 = vmatprep.subr.mxu0 0.0
    %1931 = vmatpush1.msra.mxu0 0.0
    %1932 = vmatprep.subr.mxu0 0.0
    %1933 = vmatpush1.msra.mxu0 0.0
    %1934 = vmatprep.mubr.f32.mxu0 0.0
    %1935 = vmatmul.mubr.f32.gmra.mrb[0].mxu0 %v1865
    %v1936 = vpop.f32.mrb[0].mxu0
    %v1937 = vadd.f32 0.0, %v1936
    %v1938 = vpop.f32.mrb[0].mxu0
    %1939 = vmatprep.mubr.f32.mxu0 0.0
    %1940 = vmatmul.mubr.f32.gmra.mrb[0].mxu0 %v1868
    %v1941 = vpop.f32.mrb[0].mxu0
    %v1942 = vadd.f32 0.0, %v1941
    %v1943 = vpop.f32.mrb[0].mxu0
    %1944 = vdwg.mxu0
    %v1946 = vsel %vm1083, %v1689, 0
    %v1949 = vsel %vm1083, %v1694, 0
    %1951 = vmatprep.subr.mxu0 0.0
    %1952 = vmatpush1.msra.mxu0 %v1861
    %1953 = vmatprep.subr.mxu0 0.0
    %1954 = vmatpush1.msra.mxu0 0.0
    %1955 = vmatprep.subr.mxu0 0.0
    %1956 = vmatpush1.msra.mxu0 0.0
    %1957 = vmatprep.subr.mxu0 0.0
    %1958 = vmatpush1.msra.mxu0 0.0
    %1959 = vmatprep.subr.mxu0 0.0
    %1960 = vmatpush1.msra.mxu0 0.0
    %1961 = vmatprep.subr.mxu0 0.0
    %1962 = vmatpush1.msra.mxu0 0.0
    %1963 = vmatprep.subr.mxu0 0.0
    %1964 = vmatpush1.msra.mxu0 0.0
    %1965 = vmatprep.subr.mxu0 0.0
    %1966 = vmatpush1.msra.mxu0 0.0
    %1967 = vmatprep.subr.mxu0 0.0
    %1968 = vmatpush1.msra.mxu0 0.0
    %1969 = vmatprep.subr.mxu0 0.0
    %1970 = vmatpush1.msra.mxu0 0.0
    %1971 = vmatprep.subr.mxu0 0.0
    %1972 = vmatpush1.msra.mxu0 0.0
    %1973 = vmatprep.subr.mxu0 0.0
    %1974 = vmatpush1.msra.mxu0 0.0
    %1975 = vmatprep.subr.mxu0 0.0
    %1976 = vmatpush1.msra.mxu0 0.0
    %1977 = vmatprep.subr.mxu0 0.0
    %1978 = vmatpush1.msra.mxu0 0.0
    %1979 = vmatprep.subr.mxu0 0.0
    %1980 = vmatpush1.msra.mxu0 0.0
    %1981 = vmatprep.subr.mxu0 0.0
    %1982 = vmatpush1.msra.mxu0 0.0
    %1983 = vmatprep.subr.mxu0 0.0
    %1984 = vmatpush1.msra.mxu0 0.0
    %1985 = vmatprep.subr.mxu0 0.0
    %1986 = vmatpush1.msra.mxu0 0.0
    %1987 = vmatprep.subr.mxu0 0.0
    %1988 = vmatpush1.msra.mxu0 0.0
    %1989 = vmatprep.subr.mxu0 0.0
    %1990 = vmatpush1.msra.mxu0 0.0
    %1991 = vmatprep.subr.mxu0 0.0
    %1992 = vmatpush1.msra.mxu0 0.0
    %1993 = vmatprep.subr.mxu0 0.0
    %1994 = vmatpush1.msra.mxu0 0.0
    %1995 = vmatprep.subr.mxu0 0.0
    %1996 = vmatpush1.msra.mxu0 0.0
    %1997 = vmatprep.subr.mxu0 0.0
    %1998 = vmatpush1.msra.mxu0 0.0
    %1999 = vmatprep.subr.mxu0 0.0
    %2000 = vmatpush1.msra.mxu0 0.0
    %2001 = vmatprep.subr.mxu0 0.0
    %2002 = vmatpush1.msra.mxu0 0.0
    %2003 = vmatprep.subr.mxu0 0.0
    %2004 = vmatpush1.msra.mxu0 0.0
    %2005 = vmatprep.subr.mxu0 0.0
    %2006 = vmatpush1.msra.mxu0 0.0
    %2007 = vmatprep.subr.mxu0 0.0
    %2008 = vmatpush1.msra.mxu0 0.0
    %2009 = vmatprep.subr.mxu0 0.0
    %2010 = vmatpush1.msra.mxu0 0.0
    %2011 = vmatprep.subr.mxu0 0.0
    %2012 = vmatpush1.msra.mxu0 0.0
    %2013 = vmatprep.subr.mxu0 0.0
    %2014 = vmatpush1.msra.mxu0 0.0
    %2015 = vmatprep.mubr.f32.mxu0 0.0
    %2016 = vmatmul.mubr.f32.gmra.mrb[0].mxu0 %v1946
    %v2017 = vpop.f32.mrb[0].mxu0
    %v2018 = vadd.f32 0.0, %v2017
    %v2019 = vpop.f32.mrb[0].mxu0
    %2020 = vmatprep.mubr.f32.mxu0 0.0
    %2021 = vmatmul.mubr.f32.gmra.mrb[0].mxu0 %v1949
    %v2022 = vpop.f32.mrb[0].mxu0
    %v2023 = vadd.f32 0.0, %v2022
    %v2024 = vpop.f32.mrb[0].mxu0
    %2025 = vdwg.mxu0
    %v2027 = vsel %vm1083, %v1770, 0
    %v2030 = vsel %vm1083, %v1775, 0
    %2032 = vmatprep.subr.mxu0 0.0
    %2033 = vmatpush1.msra.mxu0 %v1862
    %2034 = vmatprep.subr.mxu0 0.0
    %2035 = vmatpush1.msra.mxu0 0.0
    %2036 = vmatprep.subr.mxu0 0.0
    %2037 = vmatpush1.msra.mxu0 0.0
    %2038 = vmatprep.subr.mxu0 0.0
    %2039 = vmatpush1.msra.mxu0 0.0
    %2040 = vmatprep.subr.mxu0 0.0
    %2041 = vmatpush1.msra.mxu0 0.0
    %2042 = vmatprep.subr.mxu0 0.0
    %2043 = vmatpush1.msra.mxu0 0.0
    %2044 = vmatprep.subr.mxu0 0.0
    %2045 = vmatpush1.msra.mxu0 0.0
    %2046 = vmatprep.subr.mxu0 0.0
    %2047 = vmatpush1.msra.mxu0 0.0
    %2048 = vmatprep.subr.mxu0 0.0
    %2049 = vmatpush1.msra.mxu0 0.0
    %2050 = vmatprep.subr.mxu0 0.0
    %2051 = vmatpush1.msra.mxu0 0.0
    %2052 = vmatprep.subr.mxu0 0.0
    %2053 = vmatpush1.msra.mxu0 0.0
    %2054 = vmatprep.subr.mxu0 0.0
    %2055 = vmatpush1.msra.mxu0 0.0
    %2056 = vmatprep.subr.mxu0 0.0
    %2057 = vmatpush1.msra.mxu0 0.0
    %2058 = vmatprep.subr.mxu0 0.0
    %2059 = vmatpush1.msra.mxu0 0.0
    %2060 = vmatprep.subr.mxu0 0.0
    %2061 = vmatpush1.msra.mxu0 0.0
    %2062 = vmatprep.subr.mxu0 0.0
    %2063 = vmatpush1.msra.mxu0 0.0
    %2064 = vmatprep.subr.mxu0 0.0
    %2065 = vmatpush1.msra.mxu0 0.0
    %2066 = vmatprep.subr.mxu0 0.0
    %2067 = vmatpush1.msra.mxu0 0.0
    %2068 = vmatprep.subr.mxu0 0.0
    %2069 = vmatpush1.msra.mxu0 0.0
    %2070 = vmatprep.subr.mxu0 0.0
    %2071 = vmatpush1.msra.mxu0 0.0
    %2072 = vmatprep.subr.mxu0 0.0
    %2073 = vmatpush1.msra.mxu0 0.0
    %2074 = vmatprep.subr.mxu0 0.0
    %2075 = vmatpush1.msra.mxu0 0.0
    %2076 = vmatprep.subr.mxu0 0.0
    %2077 = vmatpush1.msra.mxu0 0.0
    %2078 = vmatprep.subr.mxu0 0.0
    %2079 = vmatpush1.msra.mxu0 0.0
    %2080 = vmatprep.subr.mxu0 0.0
    %2081 = vmatpush1.msra.mxu0 0.0
    %2082 = vmatprep.subr.mxu0 0.0
    %2083 = vmatpush1.msra.mxu0 0.0
    %2084 = vmatprep.subr.mxu0 0.0
    %2085 = vmatpush1.msra.mxu0 0.0
    %2086 = vmatprep.subr.mxu0 0.0
    %2087 = vmatpush1.msra.mxu0 0.0
    %2088 = vmatprep.subr.mxu0 0.0
    %2089 = vmatpush1.msra.mxu0 0.0
    %2090 = vmatprep.subr.mxu0 0.0
    %2091 = vmatpush1.msra.mxu0 0.0
    %2092 = vmatprep.subr.mxu0 0.0
    %2093 = vmatpush1.msra.mxu0 0.0
    %2094 = vmatprep.subr.mxu0 0.0
    %2095 = vmatpush1.msra.mxu0 0.0
    %2096 = vmatprep.mubr.f32.mxu0 0.0
    %2097 = vmatmul.mubr.f32.gmra.mrb[0].mxu0 %v2027
    %v2098 = vpop.f32.mrb[0].mxu0
    %v2099 = vadd.f32 0.0, %v2098
    %v2100 = vpop.f32.mrb[0].mxu0
    %2101 = vmatprep.mubr.f32.mxu0 0.0
    %2102 = vmatmul.mubr.f32.gmra.mrb[0].mxu0 %v2030
    %v2103 = vpop.f32.mrb[0].mxu0
    %v2104 = vadd.f32 0.0, %v2103
    %v2105 = vpop.f32.mrb[0].mxu0
    %2106 = vdwg.mxu0
    %v2108 = vsel %vm1083, %v1851, 0
    %v2111 = vsel %vm1083, %v1856, 0
    %2113 = vmatprep.subr.mxu0 0.0
    %2114 = vmatpush1.msra.mxu0 %v1863
    %2115 = vmatprep.subr.mxu0 0.0
    %2116 = vmatpush1.msra.mxu0 0.0
    %2117 = vmatprep.subr.mxu0 0.0
    %2118 = vmatpush1.msra.mxu0 0.0
    %2119 = vmatprep.subr.mxu0 0.0
    %2120 = vmatpush1.msra.mxu0 0.0
    %2121 = vmatprep.subr.mxu0 0.0
    %2122 = vmatpush1.msra.mxu0 0.0
    %2123 = vmatprep.subr.mxu0 0.0
    %2124 = vmatpush1.msra.mxu0 0.0
    %2125 = vmatprep.subr.mxu0 0.0
    %2126 = vmatpush1.msra.mxu0 0.0
    %2127 = vmatprep.subr.mxu0 0.0
    %2128 = vmatpush1.msra.mxu0 0.0
    %2129 = vmatprep.subr.mxu0 0.0
    %2130 = vmatpush1.msra.mxu0 0.0
    %2131 = vmatprep.subr.mxu0 0.0
    %2132 = vmatpush1.msra.mxu0 0.0
    %2133 = vmatprep.subr.mxu0 0.0
    %2134 = vmatpush1.msra.mxu0 0.0
    %2135 = vmatprep.subr.mxu0 0.0
    %2136 = vmatpush1.msra.mxu0 0.0
    %2137 = vmatprep.subr.mxu0 0.0
    %2138 = vmatpush1.msra.mxu0 0.0
    %2139 = vmatprep.subr.mxu0 0.0
    %2140 = vmatpush1.msra.mxu0 0.0
    %2141 = vmatprep.subr.mxu0 0.0
    %2142 = vmatpush1.msra.mxu0 0.0
    %2143 = vmatprep.subr.mxu0 0.0
    %2144 = vmatpush1.msra.mxu0 0.0
    %2145 = vmatprep.subr.mxu0 0.0
    %2146 = vmatpush1.msra.mxu0 0.0
    %2147 = vmatprep.subr.mxu0 0.0
    %2148 = vmatpush1.msra.mxu0 0.0
    %2149 = vmatprep.subr.mxu0 0.0
    %2150 = vmatpush1.msra.mxu0 0.0
    %2151 = vmatprep.subr.mxu0 0.0
    %2152 = vmatpush1.msra.mxu0 0.0
    %2153 = vmatprep.subr.mxu0 0.0
    %2154 = vmatpush1.msra.mxu0 0.0
    %2155 = vmatprep.subr.mxu0 0.0
    %2156 = vmatpush1.msra.mxu0 0.0
    %2157 = vmatprep.subr.mxu0 0.0
    %2158 = vmatpush1.msra.mxu0 0.0
    %2159 = vmatprep.subr.mxu0 0.0
    %2160 = vmatpush1.msra.mxu0 0.0
    %2161 = vmatprep.subr.mxu0 0.0
    %2162 = vmatpush1.msra.mxu0 0.0
    %2163 = vmatprep.subr.mxu0 0.0
    %2164 = vmatpush1.msra.mxu0 0.0
    %2165 = vmatprep.subr.mxu0 0.0
    %2166 = vmatpush1.msra.mxu0 0.0
    %2167 = vmatprep.subr.mxu0 0.0
    %2168 = vmatpush1.msra.mxu0 0.0
    %2169 = vmatprep.subr.mxu0 0.0
    %2170 = vmatpush1.msra.mxu0 0.0
    %2171 = vmatprep.subr.mxu0 0.0
    %2172 = vmatpush1.msra.mxu0 0.0
    %2173 = vmatprep.subr.mxu0 0.0
    %2174 = vmatpush1.msra.mxu0 0.0
    %2175 = vmatprep.subr.mxu0 0.0
    %2176 = vmatpush1.msra.mxu0 0.0
    %2177 = vmatprep.mubr.f32.mxu0 0.0
    %2178 = vmatmul.mubr.f32.gmra.mrb[0].mxu0 %v2108
    %v2179 = vpop.f32.mrb[0].mxu0
    %v2180 = vadd.f32 0.0, %v2179
    %v2181 = vpop.f32.mrb[0].mxu0
    %2182 = vmatprep.mubr.f32.mxu0 0.0
    %2183 = vmatmul.mubr.f32.gmra.mrb[0].mxu0 %v2111
    %v2184 = vpop.f32.mrb[0].mxu0
    %v2185 = vadd.f32 0.0, %v2184
    %v2186 = vpop.f32.mrb[0].mxu0
    %2187 = vdwg.mxu0
    %v2188 = vsel %vm41, %v1937, 0.0
    %v2189 = vsel %vm41, %v2018, 0.0
    %v2190 = vadd.f32 %v2188, %v2189
    %v2191 = vsel %vm41, %v2099, 0.0
    %v2192 = vadd.f32 %v2190, %v2191
    %v2193 = vsel %vm41, %v2180, 0.0
    %v2194 = vadd.f32 %v2192, %v2193
    %v2195 = vsel %vm41, %v1942, 0.0
    %v2196 = vsel %vm41, %v2023, 0.0
    %v2197 = vadd.f32 %v2195, %v2196
    %v2198 = vsel %vm41, %v2104, 0.0
    %v2199 = vadd.f32 %v2197, %v2198
    %v2200 = vsel %vm41, %v2185, 0.0
    %v2201 = vadd.f32 %v2199, %v2200
    %2202 = vst.msk [vmem:[#allocation5] sm:$0xff] %vm41, %v2194
    %2203 = vst.msk [vmem:[#allocation5 + $0x8] sm:$0xff] %vm41, %v2201
    // Predicated region
    $region18: #{tpu_custom_call.1} parent=1 // pred_check
      _
    $region19: #{tpu_custom_call.1} parent=1 // pred_check_branch
      %2205 = sbr.rel (0) target = $region21
    $region20: #{tpu_custom_call.1} parent=1 // pred_region
      %s2207 = ssub.s32 256, 256
      %2208 = vsyncadd [#allocation4], %s2207
      %s2209 = sshll.u32 [#allocation5], 4
      %s2210 = int_to_ptr.vmem [resolvable:$true] %s2209
      %2215 = dma.vmem_to_hbm [thread:$0]  %s2210, 256, %s3, [#allocation4], 128, 128, 8
    $region21: #{tpu_custom_call.1} parent=1 // pred_fallthru
      _
    // Predicated region
    $region22: #{tpu_custom_call.1} parent=1 // pred_check
      _
    $region23: #{tpu_custom_call.1} parent=1 // pred_check_branch
      %2217 = sbr.rel (0) target = $region25
    $region24: #{tpu_custom_call.1} parent=1 // pred_region
      %2218 = dma.done [#allocation4], 256
    $region25: #{tpu_custom_call.1} parent=1 // pred_fallthru
      _
    %2219 = vsyncpa [#allocation3], 1
    %2220 = vsyncpa [#allocation4], 1

</llo_original>
